<compile_context>
chip_gen: v7x
topology: tpu7x:2x2x1
jax: 0.10.0
libtpu: 0.0.40
codegen_flags: <defaults>
</compile_context>

<pallas_src>
import functools

import jax
import jax.numpy as jnp
from jax import lax
from jax.experimental import pallas as pl
from jax.experimental.pallas import tpu as pltpu

NEG_SLOPE = 0.01  # F.leaky_relu default negative slope


def _leaky_relu(z):
    # max(z, slope*z) == leaky_relu(z) for 0 < slope < 1; 2 VALU ops/elem.
    return jnp.maximum(z, NEG_SLOPE * z)


def _round_up(n, m):
    return ((n + m - 1) // m) * m


@functools.lru_cache(maxsize=None)
def _num_tensorcores():
    """Best-effort TensorCores-per-chip (v7x: 2, v5e/v6e: 1). Defaults to 1."""
    try:
        info = pltpu.get_tpu_info()
        for attr in ("num_cores", "core_count", "num_tensorcores",
                     "tensorcores_per_chip", "cores_per_chip"):
            v = getattr(info, attr, None)
            if v:
                return max(1, int(v))
    except Exception:
        pass
    try:
        v = getattr(jax.devices()[0], "num_cores", None)
        if v:
            return max(1, int(v))
    except Exception:
        pass
    return 1


@functools.lru_cache(maxsize=None)
def _vpu_supports_bf16():
    """True on v6e / v7x (packed-bf16 VALU); False on v5e and older."""
    try:
        kind = jax.devices()[0].device_kind.lower()
    except Exception:
        return False
    return ("v6" in kind) or ("v7" in kind) or ("tpu7" in kind)


def mlp_kernel(x_ref,
               w1_ref, b1_ref,
               w2_ref, b2_ref,
               w3_ref, b3_ref,
               w4_ref, b4_ref,
               w5_ref, b5_ref,
               o_ref,
               *, op_dtype, epi_dtype):
    """Fused 5-layer MLP forward for one (bb, 25) batch tile.

    Activations are kept feature-major (features, bb) so the batch lives on
    the lane axis and the output tile (1, bb) is lane-dense.  The layer-1
    matmul contracts the 25-dim of both w1 (128,25) and the x tile (bb,25),
    folding the relayout into the MXU op.  MXU operands are `op_dtype` with
    f32 accumulation; the layer 1-3 bias/LeakyReLU epilogue runs in
    `epi_dtype` (bf16 on v6e/v7x, f32 on v5e); layer-4 epilogue and the final
    64->1 VPU multiply + cross-sublane reduce stay f32.
    """
    x = x_ref[...].astype(op_dtype)                                        # (bb, 25)

    # Layer 1: w1 (128,25) . x (bb,25) contracted on the 25-dim -> (128, bb).
    h = lax.dot_general(w1_ref[...], x, (((1,), (1,)), ((), ())),
                        preferred_element_type=jnp.float32)
    h = _leaky_relu(h.astype(epi_dtype) + b1_ref[...]).astype(op_dtype)    # (128, bb)

    h = jnp.dot(w2_ref[...], h, preferred_element_type=jnp.float32)
    h = _leaky_relu(h.astype(epi_dtype) + b2_ref[...]).astype(op_dtype)    # (128, bb)

    h = jnp.dot(w3_ref[...], h, preferred_element_type=jnp.float32)
    h = _leaky_relu(h.astype(epi_dtype) + b3_ref[...]).astype(op_dtype)    # (128, bb)

    h = jnp.dot(w4_ref[...], h, preferred_element_type=jnp.float32)
    h = _leaky_relu(h + b4_ref[...])                                       # (64, bb) f32

    # layer15: out_features == 1 -> keep it off the MXU (VPU mul + XLU reduce).
    y = jnp.sum(h * w5_ref[...], axis=0, keepdims=True) + b5_ref[...]      # (1, bb)
    o_ref[...] = y.astype(o_ref.dtype)


@functools.partial(jax.jit, static_argnames=("block_b", "use_bf16"))
def regression_forward(x, params, block_b=2048, use_bf16=True):
    """Forward pass.  x: (B, 25) float32 -> (B, 1) float32."""
    B, D = x.shape
    assert D == 25

    op_dtype = jnp.bfloat16 if use_bf16 else jnp.float32
    epi_dtype = jnp.bfloat16 if (use_bf16 and _vpu_supports_bf16()) else jnp.float32

    if B < 256:
        # Small-batch path: a single tiny, overhead-bound Pallas step is not
        # worth it.  Same operand precision as the kernel path so results do
        # not jump discontinuously at the threshold.
        h = x
        for i in range(1, 5):
            h = jnp.dot(h.astype(op_dtype),
                        params[f"w{i}"].astype(op_dtype).T,
                        preferred_element_type=jnp.float32) + params[f"b{i}"]
            h = _leaky_relu(h)
        return jnp.dot(h, params["w5"].T,
                       preferred_element_type=jnp.float32) + params["b5"]

    # ---- batch tile sizing --------------------------------------------------
    # Multiple of 256 (MXU / lane friendly), never larger than B (partial
    # trailing blocks handled by Pallas), capped at block_b.  On multi-core
    # chips (v7x) shrink so each TensorCore gets >= 2 grid steps to pipeline
    # the input-tile DMA behind compute; on single-core chips keep it large.
    ncores = _num_tensorcores()
    bb = min(block_b, (B // 256) * 256)
    if ncores > 1:
        per_core = _round_up(pl.cdiv(B, 2 * ncores), 256)
        bb = min(bb, max(256, per_core))
    grid = pl.cdiv(B, bb)

    # Weights stay in PyTorch (out, in) orientation, resident in VMEM.
    w = [params[f"w{i}"].astype(op_dtype) for i in range(1, 5)]
    b123 = [params[f"b{i}"].reshape(-1, 1).astype(epi_dtype) for i in range(1, 4)]
    b4 = params["b4"].reshape(-1, 1).astype(jnp.float32)
    w5 = params["w5"].reshape(64, 1).astype(jnp.float32)
    b5 = params["b5"].reshape(1, 1).astype(jnp.float32)

    def resident(arr):
        # Tiny constant-index operand, kept whole in VMEM every grid step.
        # (pl.Buffered(1) single-buffering skipped: ~90 KB total, no VMEM
        #  pressure on any generation.)
        return pl.BlockSpec(arr.shape, lambda i: (0, 0))

    kernel = functools.partial(mlp_kernel, op_dtype=op_dtype, epi_dtype=epi_dtype)

    out = pl.pallas_call(
        kernel,
        out_shape=jax.ShapeDtypeStruct((1, B), jnp.float32),
        grid=(grid,),
        in_specs=[
            # Contiguous (bb, 25) row tile of the untouched (B, 25) input;
            # no wrapper-side transpose / pad pass over HBM.
            pl.BlockSpec((bb, 25), lambda i: (i, 0)),
            resident(w[0]), resident(b123[0]),
            resident(w[1]), resident(b123[1]),
            resident(w[2]), resident(b123[2]),
            resident(w[3]), resident(b4),
            resident(w5), resident(b5),
        ],
        out_specs=pl.BlockSpec((1, bb), lambda i: (0, i)),   # lane-dense output
        compiler_params=pltpu.CompilerParams(
            dimension_semantics=("parallel",)),
    )(x, w[0], b123[0], w[1], b123[1], w[2], b123[2], w[3], b4, w5, b5)

    return out.reshape(B, 1)


def init_params(key):
    """PyTorch nn.Linear-style init: weights (out, in), biases (out,)."""
    dims = [(25, 128), (128, 128), (128, 128), (128, 64), (64, 1)]
    params = {}
    for idx, (fan_in, fan_out) in enumerate(dims, start=1):
        key, kw, kb = jax.random.split(key, 3)
        bound = 1.0 / jnp.sqrt(jnp.float32(fan_in))
        params[f"w{idx}"] = jax.random.uniform(
            kw, (fan_out, fan_in), jnp.float32, -bound, bound)
        params[f"b{idx}"] = jax.random.uniform(
            kb, (fan_out,), jnp.float32, -bound, bound)
    return params


def reference_forward(x, params):
    """Plain-JAX f32 reference for correctness checks."""
    h = x
    for idx in range(1, 5):
        h = h @ params[f"w{idx}"].T + params[f"b{idx}"]
        h = jnp.where(h > 0, h, NEG_SLOPE * h)
    return h @ params["w5"].T + params["b5"]


if __name__ == "__main__":
    key = jax.random.PRNGKey(0)
    key, kx1, kx2 = jax.random.split(key, 3)
    params = init_params(key)

    # Batch large enough to exercise the Pallas kernel (multiple grid steps
    # plus a partial trailing block of 8 rows).
    x_big = jax.random.normal(kx1, (520, 25), jnp.float32)
    ref_big = reference_forward(x_big, params)

    # Default (bf16 MXU operands, f32 accumulation) -> loosened tolerance.
    out_big = jax.block_until_ready(regression_forward(x_big, params))
    assert out_big.shape == (520, 1)
    assert jnp.allclose(out_big, ref_big, atol=5e-2, rtol=5e-2), (
        float(jnp.max(jnp.abs(out_big - ref_big))))

    # f32 parity mode: whole kernel in f32, much tighter agreement.
    out_f32 = jax.block_until_ready(
        regression_forward(x_big, params, use_bf16=False))
    assert out_f32.shape == (520, 1)
    assert jnp.allclose(out_f32, ref_big, atol=1e-2, rtol=1e-2), (
        float(jnp.max(jnp.abs(out_f32 - ref_big))))

    # Tiny batch takes the XLA path (same operand precision as the kernel).
    x_small = jax.random.normal(kx2, (8, 25), jnp.float32)
    out_small = jax.block_until_ready(regression_forward(x_small, params))
    ref_small = reference_forward(x_small, params)
    assert out_small.shape == (8, 1)
    assert jnp.allclose(out_small, ref_small, atol=5e-2, rtol=5e-2)

    print("KERNEL_OK")
</pallas_src>

<mosaic_0001>
module attributes {stable_mosaic.version = 11 : i64} {
  func.func @mlp_kernel(%arg0: i32, %arg1: memref<512x25xf32, #tpu.memory_space<vmem>>, %arg2: memref<128x25xbf16, #tpu.memory_space<vmem>>, %arg3: memref<128x1xf32, #tpu.memory_space<vmem>>, %arg4: memref<128x128xbf16, #tpu.memory_space<vmem>>, %arg5: memref<128x1xf32, #tpu.memory_space<vmem>>, %arg6: memref<128x128xbf16, #tpu.memory_space<vmem>>, %arg7: memref<128x1xf32, #tpu.memory_space<vmem>>, %arg8: memref<64x128xbf16, #tpu.memory_space<vmem>>, %arg9: memref<64x1xf32, #tpu.memory_space<vmem>>, %arg10: memref<64x1xf32, #tpu.memory_space<vmem>>, %arg11: memref<1x1xf32, #tpu.memory_space<vmem>>, %arg12: memref<1x512xf32, #tpu.memory_space<vmem>>) attributes {dimension_semantics = [#tpu.dimension_semantics<parallel>], iteration_bounds = array<i64: 2>, scalar_prefetch = 0 : i64, scratch_operands = 0 : i64, tpu.core_type = #tpu.core_type<tc>, window_params = [{transform_indices = @transform_0, window_bounds = array<i64: 512, 25>}, {pipeline_mode = #tpu.pipeline_mode<synchronous>, transform_indices = @transform_1, window_bounds = array<i64: 128, 25>}, {pipeline_mode = #tpu.pipeline_mode<synchronous>, transform_indices = @transform_2, window_bounds = array<i64: 128, 1>}, {pipeline_mode = #tpu.pipeline_mode<synchronous>, transform_indices = @transform_3, window_bounds = array<i64: 128, 128>}, {pipeline_mode = #tpu.pipeline_mode<synchronous>, transform_indices = @transform_4, window_bounds = array<i64: 128, 1>}, {pipeline_mode = #tpu.pipeline_mode<synchronous>, transform_indices = @transform_5, window_bounds = array<i64: 128, 128>}, {pipeline_mode = #tpu.pipeline_mode<synchronous>, transform_indices = @transform_6, window_bounds = array<i64: 128, 1>}, {pipeline_mode = #tpu.pipeline_mode<synchronous>, transform_indices = @transform_7, window_bounds = array<i64: 64, 128>}, {pipeline_mode = #tpu.pipeline_mode<synchronous>, transform_indices = @transform_8, window_bounds = array<i64: 64, 1>}, {pipeline_mode = #tpu.pipeline_mode<synchronous>, transform_indices = @transform_9, window_bounds = array<i64: 64, 1>}, {pipeline_mode = #tpu.pipeline_mode<synchronous>, transform_indices = @transform_10, window_bounds = array<i64: 1, 1>}, {transform_indices = @transform_11, window_bounds = array<i64: 1, 512>}]} {
    %c0 = arith.constant 0 : index
    %c0_0 = arith.constant 0 : index
    %0 = vector.load %arg1[%c0, %c0_0] : memref<512x25xf32, #tpu.memory_space<vmem>>, vector<512x25xf32>
    %1 = arith.truncf %0 : vector<512x25xf32> to vector<512x25xbf16>
    %c0_1 = arith.constant 0 : index
    %c0_2 = arith.constant 0 : index
    %2 = vector.load %arg2[%c0_1, %c0_2] : memref<128x25xbf16, #tpu.memory_space<vmem>>, vector<128x25xbf16>
    %cst = arith.constant dense<0.000000e+00> : vector<128x512xf32>
    %3 = tpu.matmul %2, %1, %cst {dimension_numbers = #tpu.dot_dimension_numbers<[1], [1], [0], [0], [0, 0, 1, 0], [], []>} : vector<128x25xbf16>, vector<512x25xbf16>, vector<128x512xf32> -> vector<128x512xf32>
    %c0_3 = arith.constant 0 : index
    %c0_4 = arith.constant 0 : index
    %4 = vector.load %arg3[%c0_3, %c0_4] : memref<128x1xf32, #tpu.memory_space<vmem>>, vector<128x1xf32>
    %5 = vector.broadcast %4 : vector<128x1xf32> to vector<128x512xf32>
    %6 = arith.addf %3, %5 : vector<128x512xf32>
    %cst_5 = arith.constant 0.00999999977 : f32
    %7 = vector.broadcast %cst_5 : f32 to vector<128x512xf32>
    %8 = arith.mulf %7, %6 : vector<128x512xf32>
    %9 = arith.maximumf %6, %8 : vector<128x512xf32>
    %10 = arith.truncf %9 : vector<128x512xf32> to vector<128x512xbf16>
    %c0_6 = arith.constant 0 : index
    %c0_7 = arith.constant 0 : index
    %11 = vector.load %arg4[%c0_6, %c0_7] : memref<128x128xbf16, #tpu.memory_space<vmem>>, vector<128x128xbf16>
    %cst_8 = arith.constant dense<0.000000e+00> : vector<128x512xf32>
    %12 = tpu.matmul %11, %10, %cst_8 {dimension_numbers = #tpu.dot_dimension_numbers<[1], [0], [0], [1], [0, 0, 1, 1], [], []>} : vector<128x128xbf16>, vector<128x512xbf16>, vector<128x512xf32> -> vector<128x512xf32>
    %c0_9 = arith.constant 0 : index
    %c0_10 = arith.constant 0 : index
    %13 = vector.load %arg5[%c0_9, %c0_10] : memref<128x1xf32, #tpu.memory_space<vmem>>, vector<128x1xf32>
    %14 = vector.broadcast %13 : vector<128x1xf32> to vector<128x512xf32>
    %15 = arith.addf %12, %14 : vector<128x512xf32>
    %cst_11 = arith.constant 0.00999999977 : f32
    %16 = vector.broadcast %cst_11 : f32 to vector<128x512xf32>
    %17 = arith.mulf %16, %15 : vector<128x512xf32>
    %18 = arith.maximumf %15, %17 : vector<128x512xf32>
    %19 = arith.truncf %18 : vector<128x512xf32> to vector<128x512xbf16>
    %c0_12 = arith.constant 0 : index
    %c0_13 = arith.constant 0 : index
    %20 = vector.load %arg6[%c0_12, %c0_13] : memref<128x128xbf16, #tpu.memory_space<vmem>>, vector<128x128xbf16>
    %cst_14 = arith.constant dense<0.000000e+00> : vector<128x512xf32>
    %21 = tpu.matmul %20, %19, %cst_14 {dimension_numbers = #tpu.dot_dimension_numbers<[1], [0], [0], [1], [0, 0, 1, 1], [], []>} : vector<128x128xbf16>, vector<128x512xbf16>, vector<128x512xf32> -> vector<128x512xf32>
    %c0_15 = arith.constant 0 : index
    %c0_16 = arith.constant 0 : index
    %22 = vector.load %arg7[%c0_15, %c0_16] : memref<128x1xf32, #tpu.memory_space<vmem>>, vector<128x1xf32>
    %23 = vector.broadcast %22 : vector<128x1xf32> to vector<128x512xf32>
    %24 = arith.addf %21, %23 : vector<128x512xf32>
    %cst_17 = arith.constant 0.00999999977 : f32
    %25 = vector.broadcast %cst_17 : f32 to vector<128x512xf32>
    %26 = arith.mulf %25, %24 : vector<128x512xf32>
    %27 = arith.maximumf %24, %26 : vector<128x512xf32>
    %28 = arith.truncf %27 : vector<128x512xf32> to vector<128x512xbf16>
    %c0_18 = arith.constant 0 : index
    %c0_19 = arith.constant 0 : index
    %29 = vector.load %arg8[%c0_18, %c0_19] : memref<64x128xbf16, #tpu.memory_space<vmem>>, vector<64x128xbf16>
    %cst_20 = arith.constant dense<0.000000e+00> : vector<64x512xf32>
    %30 = tpu.matmul %29, %28, %cst_20 {dimension_numbers = #tpu.dot_dimension_numbers<[1], [0], [0], [1], [0, 0, 1, 1], [], []>} : vector<64x128xbf16>, vector<128x512xbf16>, vector<64x512xf32> -> vector<64x512xf32>
    %c0_21 = arith.constant 0 : index
    %c0_22 = arith.constant 0 : index
    %31 = vector.load %arg9[%c0_21, %c0_22] : memref<64x1xf32, #tpu.memory_space<vmem>>, vector<64x1xf32>
    %32 = vector.broadcast %31 : vector<64x1xf32> to vector<64x512xf32>
    %33 = arith.addf %30, %32 : vector<64x512xf32>
    %cst_23 = arith.constant 0.00999999977 : f32
    %34 = vector.broadcast %cst_23 : f32 to vector<64x512xf32>
    %35 = arith.mulf %34, %33 : vector<64x512xf32>
    %36 = arith.maximumf %33, %35 : vector<64x512xf32>
    %c0_24 = arith.constant 0 : index
    %c0_25 = arith.constant 0 : index
    %37 = vector.load %arg10[%c0_24, %c0_25] : memref<64x1xf32, #tpu.memory_space<vmem>>, vector<64x1xf32>
    %38 = vector.broadcast %37 : vector<64x1xf32> to vector<64x512xf32>
    %39 = arith.mulf %36, %38 : vector<64x512xf32>
    %cst_26 = arith.constant dense<0.000000e+00> : vector<512xf32>
    %40 = vector.multi_reduction <add>, %39, %cst_26 [0] : vector<64x512xf32> to vector<512xf32>
    %41 = vector.shape_cast %40 : vector<512xf32> to vector<1x512xf32>
    %c0_27 = arith.constant 0 : index
    %c0_28 = arith.constant 0 : index
    %42 = vector.load %arg11[%c0_27, %c0_28] : memref<1x1xf32, #tpu.memory_space<vmem>>, vector<1x1xf32>
    %43 = vector.broadcast %42 : vector<1x1xf32> to vector<1x512xf32>
    %44 = arith.addf %41, %43 : vector<1x512xf32>
    %c0_29 = arith.constant 0 : index
    %c0_30 = arith.constant 0 : index
    %45 = vector.load %arg12[%c0_29, %c0_30] : memref<1x512xf32, #tpu.memory_space<vmem>>, vector<1x512xf32>
    tpu.vector_store %arg12[%c0_29, %c0_30], %44 {strides = array<i32>} : memref<1x512xf32, #tpu.memory_space<vmem>>, vector<1x512xf32>,
    return
  }
  func.func @transform_0(%arg0: i32) -> (i32, i32) {
    %c0_i32 = arith.constant 0 : i32
    %c0_i32_0 = arith.constant 0 : i32
    return %arg0, %c0_i32 : i32, i32
  }
  func.func @transform_1(%arg0: i32) -> (i32, i32) {
    %c0_i32 = arith.constant 0 : i32
    %c0_i32_0 = arith.constant 0 : i32
    %c0_i32_1 = arith.constant 0 : i32
    return %c0_i32, %c0_i32_0 : i32, i32
  }
  func.func @transform_2(%arg0: i32) -> (i32, i32) {
    %c0_i32 = arith.constant 0 : i32
    %c0_i32_0 = arith.constant 0 : i32
    %c0_i32_1 = arith.constant 0 : i32
    return %c0_i32, %c0_i32_0 : i32, i32
  }
  func.func @transform_3(%arg0: i32) -> (i32, i32) {
    %c0_i32 = arith.constant 0 : i32
    %c0_i32_0 = arith.constant 0 : i32
    %c0_i32_1 = arith.constant 0 : i32
    return %c0_i32, %c0_i32_0 : i32, i32
  }
  func.func @transform_4(%arg0: i32) -> (i32, i32) {
    %c0_i32 = arith.constant 0 : i32
    %c0_i32_0 = arith.constant 0 : i32
    %c0_i32_1 = arith.constant 0 : i32
    return %c0_i32, %c0_i32_0 : i32, i32
  }
  func.func @transform_5(%arg0: i32) -> (i32, i32) {
    %c0_i32 = arith.constant 0 : i32
    %c0_i32_0 = arith.constant 0 : i32
    %c0_i32_1 = arith.constant 0 : i32
    return %c0_i32, %c0_i32_0 : i32, i32
  }
  func.func @transform_6(%arg0: i32) -> (i32, i32) {
    %c0_i32 = arith.constant 0 : i32
    %c0_i32_0 = arith.constant 0 : i32
    %c0_i32_1 = arith.constant 0 : i32
    return %c0_i32, %c0_i32_0 : i32, i32
  }
  func.func @transform_7(%arg0: i32) -> (i32, i32) {
    %c0_i32 = arith.constant 0 : i32
    %c0_i32_0 = arith.constant 0 : i32
    %c0_i32_1 = arith.constant 0 : i32
    return %c0_i32, %c0_i32_0 : i32, i32
  }
  func.func @transform_8(%arg0: i32) -> (i32, i32) {
    %c0_i32 = arith.constant 0 : i32
    %c0_i32_0 = arith.constant 0 : i32
    %c0_i32_1 = arith.constant 0 : i32
    return %c0_i32, %c0_i32_0 : i32, i32
  }
  func.func @transform_9(%arg0: i32) -> (i32, i32) {
    %c0_i32 = arith.constant 0 : i32
    %c0_i32_0 = arith.constant 0 : i32
    %c0_i32_1 = arith.constant 0 : i32
    return %c0_i32, %c0_i32_0 : i32, i32
  }
  func.func @transform_10(%arg0: i32) -> (i32, i32) {
    %c0_i32 = arith.constant 0 : i32
    %c0_i32_0 = arith.constant 0 : i32
    %c0_i32_1 = arith.constant 0 : i32
    return %c0_i32, %c0_i32_0 : i32, i32
  }
  func.func @transform_11(%arg0: i32) -> (i32, i32) {
    %c0_i32 = arith.constant 0 : i32
    %c0_i32_0 = arith.constant 0 : i32
    return %c0_i32, %arg0 : i32, i32
  }
}

</mosaic_0001>

<llo_original>
// kernel: regression_forward.1
$region0: #{regression_forward.1}
  #allocation0 [shape = 'u32[]', space=smem, size = 0x4, offset = 0x4, fixed_abs, tag = 'smem constant byte address 0x4 - core index']
  #allocation1 [shape = 'u32[144,128]{1,0:T(1,128)}', space=vmem, size = 0x12000, scoped, tag = 'internal scratch']
  #allocation2 [shape = 'f32[1,1]{1,0:T(1,128)S(1)}', space=vmem, size = 0x200, scoped, tag = 'scoped memory for regression_forward.1']
  %s0 = inlined_call_operand.vmem [shape: f32[520,25], index: 0, kind: input, shape index: {}]
  %s1 = inlined_call_operand.vmem [shape: bf16[128,25], index: 1, kind: input, shape index: {}]
  %s2 = inlined_call_operand.vmem [shape: f32[128,1], index: 2, kind: input, shape index: {}]
  %s3 = inlined_call_operand.vmem [shape: bf16[128,128], index: 3, kind: input, shape index: {}]
  %s4 = inlined_call_operand.vmem [shape: f32[128,1], index: 4, kind: input, shape index: {}]
  %s5 = inlined_call_operand.vmem [shape: bf16[128,128], index: 5, kind: input, shape index: {}]
  %s6 = inlined_call_operand.vmem [shape: f32[128,1], index: 6, kind: input, shape index: {}]
  %s7 = inlined_call_operand.vmem [shape: bf16[64,128], index: 7, kind: input, shape index: {}]
  %s8 = inlined_call_operand.vmem [shape: f32[64,1], index: 8, kind: input, shape index: {}]
  %s9 = inlined_call_operand.vmem [shape: f32[64,1], index: 9, kind: input, shape index: {}]
  %s10 = inlined_call_operand.<no memory space> [shape: f32[1,1], index: 10, kind: input, shape index: {}]
  %s11 = inlined_call_operand.hbm [shape: f32[1,520], index: 11, kind: output, shape index: {}]
  %s12 = sld [smem:[#allocation0]]
  $region77: #{regression_forward.1} parent=0
    _
  %s14 = ssub.s32 1, %s12
  %s15 = scalar_select 0, %s14, %s12
  %v16 = vstv %s10
  %17 = vst [vmem:[#allocation2] sm:$0x1] %v16
  $region1: #{regression_forward.1} parent=0
    #allocation3 [shape = 'u8[4096]{0}', space=vmem, size = 0x1000, scoped, tag = 'output window, operand 0']
    #allocation4 [shape = 's32[2]{0}', space=sflag, size = 0x8, scoped, tag = 'scoped memory for regression_forward.1']
    %18 = vsyncpa [#allocation4], 0
    %s19 = scalar_lea.sflag [#allocation4], 1
    %20 = vsyncpa %s19, 0
    loop: start=0, step=1, limit=4
    $region2: #{regression_forward.1} parent=1 // loop_pre_header
      _
    $region3: #{regression_forward.1} parent=1 // loop_header
      %s22 = sphi 0, %s26
      %p23 = scmp.ge.s32.totalorder %s22, 4
      %s32 = sphi 0, %s34
      %s35 = sphi 0, %s32
      %s36 = sphi 0, %s35
      %s52 = sphi 0, %s36
      %s56 = sphi 0, %s56
      %s58 = sphi 0, %s56
      %s59 = sphi 0, %s58
      %s73 = sphi 0, %s59
      %s77 = sphi 0, %s77
      %s79 = sphi 0, %s77
      %s80 = sphi 0, %s79
      %s94 = sphi 0, %s80
      %s98 = sphi 0, %s98
      %s100 = sphi 0, %s98
      %s101 = sphi 0, %s100
      %s115 = sphi 0, %s101
      %s119 = sphi 0, %s119
      %s121 = sphi 0, %s119
      %s122 = sphi 0, %s121
      %s136 = sphi 0, %s122
      %s140 = sphi 0, %s140
      %s142 = sphi 0, %s140
      %s143 = sphi 0, %s142
      %s157 = sphi 0, %s143
      %s161 = sphi 0, %s161
      %s163 = sphi 0, %s161
      %s164 = sphi 0, %s163
      %s178 = sphi 0, %s164
      %s182 = sphi 0, %s182
      %s184 = sphi 0, %s182
      %s185 = sphi 0, %s184
      %s199 = sphi 0, %s185
      %s203 = sphi 0, %s203
      %s205 = sphi 0, %s203
      %s206 = sphi 0, %s205
      %s220 = sphi 0, %s206
      %s224 = sphi 0, %s224
      %s226 = sphi 0, %s224
      %s227 = sphi 0, %s226
      %s241 = sphi 0, %s227
      %s245 = sphi 0, %s245
      %s247 = sphi 0, %s245
      %s248 = sphi 0, %s247
      %s262 = sphi 0, %s248
      %s268 = sphi 0, %s270
      %s271 = sphi 0, %s268
      %s272 = sphi 0, %s271
      %s288 = sphi 0, %s272
    $region4: #{regression_forward.1} parent=1 // loop_header_branch
      %25 = sbr.rel (%p23) target = $region8
    $region5: #{regression_forward.1} parent=1 // loop_body
      %s27 = ssub.s32 %s22, 1
      %s28 = ssub.s32 %s22, 2
      %s29 = sadd.s32 %s22, 1
      %s30 = ssub.s32 %s22, %s29
      %p31 = scmp.eq.s32.totalorder %s30, 0
      %s33 = sadd.s32 %s32, 1
      %s34 = scalar_select %p31, %s32, %s33
      %p37 = pneg %p31
      %p38 = scmp.eq.s32.totalorder %s22, 1
      %p39 = por %p37, %p38
      %p40 = scmp.ne.s32.totalorder %s32, %s35
      %p41 = scmp.eq.s32.totalorder %s22, 0
      %p42 = por %p40, %p41
      %p43 = scmp.ne.s32.totalorder %s32, %s35
      %p44 = scmp.eq.s32.totalorder %s27, 1
      %p45 = por %p43, %p44
      %p46 = scmp.ne.s32.totalorder %s35, %s36
      %p47 = scmp.eq.s32.totalorder %s27, 0
      %p48 = por %p46, %p47
      %p49 = scmp.ne.s32.totalorder %s35, %s36
      %p50 = scmp.eq.s32.totalorder %s28, 1
      %p51 = por %p49, %p50
      %p53 = scmp.ne.s32.totalorder %s36, %s52
      %p54 = scmp.eq.s32.totalorder %s28, 0
      %p55 = por %p53, %p54
      %s57 = sadd.s32 %s56, 1
      %p60 = scmp.eq.s32.totalorder %s22, 1
      %p61 = scmp.ne.s32.totalorder %s56, %s58
      %p62 = scmp.eq.s32.totalorder %s22, 0
      %p63 = por %p61, %p62
      %p64 = scmp.ne.s32.totalorder %s56, %s58
      %p65 = scmp.eq.s32.totalorder %s27, 1
      %p66 = por %p64, %p65
      %p67 = scmp.ne.s32.totalorder %s58, %s59
      %p68 = scmp.eq.s32.totalorder %s27, 0
      %p69 = por %p67, %p68
      %p70 = scmp.ne.s32.totalorder %s58, %s59
      %p71 = scmp.eq.s32.totalorder %s28, 1
      %p72 = por %p70, %p71
      %p74 = scmp.ne.s32.totalorder %s59, %s73
      %p75 = scmp.eq.s32.totalorder %s28, 0
      %p76 = por %p74, %p75
      %s78 = sadd.s32 %s77, 1
      %p81 = scmp.eq.s32.totalorder %s22, 1
      %p82 = scmp.ne.s32.totalorder %s77, %s79
      %p83 = scmp.eq.s32.totalorder %s22, 0
      %p84 = por %p82, %p83
      %p85 = scmp.ne.s32.totalorder %s77, %s79
      %p86 = scmp.eq.s32.totalorder %s27, 1
      %p87 = por %p85, %p86
      %p88 = scmp.ne.s32.totalorder %s79, %s80
      %p89 = scmp.eq.s32.totalorder %s27, 0
      %p90 = por %p88, %p89
      %p91 = scmp.ne.s32.totalorder %s79, %s80
      %p92 = scmp.eq.s32.totalorder %s28, 1
      %p93 = por %p91, %p92
      %p95 = scmp.ne.s32.totalorder %s80, %s94
      %p96 = scmp.eq.s32.totalorder %s28, 0
      %p97 = por %p95, %p96
      %s99 = sadd.s32 %s98, 1
      %p102 = scmp.eq.s32.totalorder %s22, 1
      %p103 = scmp.ne.s32.totalorder %s98, %s100
      %p104 = scmp.eq.s32.totalorder %s22, 0
      %p105 = por %p103, %p104
      %p106 = scmp.ne.s32.totalorder %s98, %s100
      %p107 = scmp.eq.s32.totalorder %s27, 1
      %p108 = por %p106, %p107
      %p109 = scmp.ne.s32.totalorder %s100, %s101
      %p110 = scmp.eq.s32.totalorder %s27, 0
      %p111 = por %p109, %p110
      %p112 = scmp.ne.s32.totalorder %s100, %s101
      %p113 = scmp.eq.s32.totalorder %s28, 1
      %p114 = por %p112, %p113
      %p116 = scmp.ne.s32.totalorder %s101, %s115
      %p117 = scmp.eq.s32.totalorder %s28, 0
      %p118 = por %p116, %p117
      %s120 = sadd.s32 %s119, 1
      %p123 = scmp.eq.s32.totalorder %s22, 1
      %p124 = scmp.ne.s32.totalorder %s119, %s121
      %p125 = scmp.eq.s32.totalorder %s22, 0
      %p126 = por %p124, %p125
      %p127 = scmp.ne.s32.totalorder %s119, %s121
      %p128 = scmp.eq.s32.totalorder %s27, 1
      %p129 = por %p127, %p128
      %p130 = scmp.ne.s32.totalorder %s121, %s122
      %p131 = scmp.eq.s32.totalorder %s27, 0
      %p132 = por %p130, %p131
      %p133 = scmp.ne.s32.totalorder %s121, %s122
      %p134 = scmp.eq.s32.totalorder %s28, 1
      %p135 = por %p133, %p134
      %p137 = scmp.ne.s32.totalorder %s122, %s136
      %p138 = scmp.eq.s32.totalorder %s28, 0
      %p139 = por %p137, %p138
      %s141 = sadd.s32 %s140, 1
      %p144 = scmp.eq.s32.totalorder %s22, 1
      %p145 = scmp.ne.s32.totalorder %s140, %s142
      %p146 = scmp.eq.s32.totalorder %s22, 0
      %p147 = por %p145, %p146
      %p148 = scmp.ne.s32.totalorder %s140, %s142
      %p149 = scmp.eq.s32.totalorder %s27, 1
      %p150 = por %p148, %p149
      %p151 = scmp.ne.s32.totalorder %s142, %s143
      %p152 = scmp.eq.s32.totalorder %s27, 0
      %p153 = por %p151, %p152
      %p154 = scmp.ne.s32.totalorder %s142, %s143
      %p155 = scmp.eq.s32.totalorder %s28, 1
      %p156 = por %p154, %p155
      %p158 = scmp.ne.s32.totalorder %s143, %s157
      %p159 = scmp.eq.s32.totalorder %s28, 0
      %p160 = por %p158, %p159
      %s162 = sadd.s32 %s161, 1
      %p165 = scmp.eq.s32.totalorder %s22, 1
      %p166 = scmp.ne.s32.totalorder %s161, %s163
      %p167 = scmp.eq.s32.totalorder %s22, 0
      %p168 = por %p166, %p167
      %p169 = scmp.ne.s32.totalorder %s161, %s163
      %p170 = scmp.eq.s32.totalorder %s27, 1
      %p171 = por %p169, %p170
      %p172 = scmp.ne.s32.totalorder %s163, %s164
      %p173 = scmp.eq.s32.totalorder %s27, 0
      %p174 = por %p172, %p173
      %p175 = scmp.ne.s32.totalorder %s163, %s164
      %p176 = scmp.eq.s32.totalorder %s28, 1
      %p177 = por %p175, %p176
      %p179 = scmp.ne.s32.totalorder %s164, %s178
      %p180 = scmp.eq.s32.totalorder %s28, 0
      %p181 = por %p179, %p180
      %s183 = sadd.s32 %s182, 1
      %p186 = scmp.eq.s32.totalorder %s22, 1
      %p187 = scmp.ne.s32.totalorder %s182, %s184
      %p188 = scmp.eq.s32.totalorder %s22, 0
      %p189 = por %p187, %p188
      %p190 = scmp.ne.s32.totalorder %s182, %s184
      %p191 = scmp.eq.s32.totalorder %s27, 1
      %p192 = por %p190, %p191
      %p193 = scmp.ne.s32.totalorder %s184, %s185
      %p194 = scmp.eq.s32.totalorder %s27, 0
      %p195 = por %p193, %p194
      %p196 = scmp.ne.s32.totalorder %s184, %s185
      %p197 = scmp.eq.s32.totalorder %s28, 1
      %p198 = por %p196, %p197
      %p200 = scmp.ne.s32.totalorder %s185, %s199
      %p201 = scmp.eq.s32.totalorder %s28, 0
      %p202 = por %p200, %p201
      %s204 = sadd.s32 %s203, 1
      %p207 = scmp.eq.s32.totalorder %s22, 1
      %p208 = scmp.ne.s32.totalorder %s203, %s205
      %p209 = scmp.eq.s32.totalorder %s22, 0
      %p210 = por %p208, %p209
      %p211 = scmp.ne.s32.totalorder %s203, %s205
      %p212 = scmp.eq.s32.totalorder %s27, 1
      %p213 = por %p211, %p212
      %p214 = scmp.ne.s32.totalorder %s205, %s206
      %p215 = scmp.eq.s32.totalorder %s27, 0
      %p216 = por %p214, %p215
      %p217 = scmp.ne.s32.totalorder %s205, %s206
      %p218 = scmp.eq.s32.totalorder %s28, 1
      %p219 = por %p217, %p218
      %p221 = scmp.ne.s32.totalorder %s206, %s220
      %p222 = scmp.eq.s32.totalorder %s28, 0
      %p223 = por %p221, %p222
      %s225 = sadd.s32 %s224, 1
      %p228 = scmp.eq.s32.totalorder %s22, 1
      %p229 = scmp.ne.s32.totalorder %s224, %s226
      %p230 = scmp.eq.s32.totalorder %s22, 0
      %p231 = por %p229, %p230
      %p232 = scmp.ne.s32.totalorder %s224, %s226
      %p233 = scmp.eq.s32.totalorder %s27, 1
      %p234 = por %p232, %p233
      %p235 = scmp.ne.s32.totalorder %s226, %s227
      %p236 = scmp.eq.s32.totalorder %s27, 0
      %p237 = por %p235, %p236
      %p238 = scmp.ne.s32.totalorder %s226, %s227
      %p239 = scmp.eq.s32.totalorder %s28, 1
      %p240 = por %p238, %p239
      %p242 = scmp.ne.s32.totalorder %s227, %s241
      %p243 = scmp.eq.s32.totalorder %s28, 0
      %p244 = por %p242, %p243
      %s246 = sadd.s32 %s245, 1
      %p249 = scmp.eq.s32.totalorder %s22, 1
      %p250 = scmp.ne.s32.totalorder %s245, %s247
      %p251 = scmp.eq.s32.totalorder %s22, 0
      %p252 = por %p250, %p251
      %p253 = scmp.ne.s32.totalorder %s245, %s247
      %p254 = scmp.eq.s32.totalorder %s27, 1
      %p255 = por %p253, %p254
      %p256 = scmp.ne.s32.totalorder %s247, %s248
      %p257 = scmp.eq.s32.totalorder %s27, 0
      %p258 = por %p256, %p257
      %p259 = scmp.ne.s32.totalorder %s247, %s248
      %p260 = scmp.eq.s32.totalorder %s28, 1
      %p261 = por %p259, %p260
      %p263 = scmp.ne.s32.totalorder %s248, %s262
      %p264 = scmp.eq.s32.totalorder %s28, 0
      %p265 = por %p263, %p264
      %s266 = ssub.s32 %s22, %s29
      %p267 = scmp.eq.s32.totalorder %s266, 0
      %s269 = sadd.s32 %s268, 1
      %s270 = scalar_select %p267, %s268, %s269
      %p273 = pneg %p267
      %p274 = scmp.eq.s32.totalorder %s22, 1
      %p275 = por %p273, %p274
      %p276 = scmp.ne.s32.totalorder %s268, %s271
      %p277 = scmp.eq.s32.totalorder %s22, 0
      %p278 = por %p276, %p277
      %p279 = scmp.ne.s32.totalorder %s268, %s271
      %p280 = scmp.eq.s32.totalorder %s27, 1
      %p281 = por %p279, %p280
      %p282 = scmp.ne.s32.totalorder %s271, %s272
      %p283 = scmp.eq.s32.totalorder %s27, 0
      %p284 = por %p282, %p283
      %p285 = scmp.ne.s32.totalorder %s271, %s272
      %p286 = scmp.eq.s32.totalorder %s28, 1
      %p287 = por %p285, %p286
      %p289 = scmp.ne.s32.totalorder %s272, %s288
      %p290 = scmp.eq.s32.totalorder %s28, 0
      %p291 = por %p289, %p290
      %p292 = scmp.le.s32.totalorder 1, %s22
      %p293 = scmp.lt.s32.totalorder %s22, 3
      %p294 = pnand %p292, %p293
      %p295 = pneg %p294
      // Predicated region
      $region9: #{regression_forward.1} parent=5 // pred_check
        _
      $region10: #{regression_forward.1} parent=5 // pred_check_branch
        %297 = sbr.rel (%p294) target = $region12
      $region11: #{regression_forward.1} parent=5 // pred_region
        %s298 = ssub.s32 %s22, 1
        // Predicated region
        $region13: #{regression_forward.1} parent=11 // pred_check
          %p299 = pneg %p69
        $region14: #{regression_forward.1} parent=11 // pred_check_branch
          %301 = sbr.rel (%p299) target = $region16
        $region15: #{regression_forward.1} parent=11 // pred_region
          _
        $region16: #{regression_forward.1} parent=11 // pred_fallthru
          _
        // Predicated region
        $region17: #{regression_forward.1} parent=11 // pred_check
          %p302 = pneg %p90
        $region18: #{regression_forward.1} parent=11 // pred_check_branch
          %304 = sbr.rel (%p302) target = $region20
        $region19: #{regression_forward.1} parent=11 // pred_region
          _
        $region20: #{regression_forward.1} parent=11 // pred_fallthru
          _
        // Predicated region
        $region21: #{regression_forward.1} parent=11 // pred_check
          %p305 = pneg %p111
        $region22: #{regression_forward.1} parent=11 // pred_check_branch
          %307 = sbr.rel (%p305) target = $region24
        $region23: #{regression_forward.1} parent=11 // pred_region
          _
        $region24: #{regression_forward.1} parent=11 // pred_fallthru
          _
        // Predicated region
        $region25: #{regression_forward.1} parent=11 // pred_check
          %p308 = pneg %p132
        $region26: #{regression_forward.1} parent=11 // pred_check_branch
          %310 = sbr.rel (%p308) target = $region28
        $region27: #{regression_forward.1} parent=11 // pred_region
          _
        $region28: #{regression_forward.1} parent=11 // pred_fallthru
          _
        // Predicated region
        $region29: #{regression_forward.1} parent=11 // pred_check
          %p311 = pneg %p153
        $region30: #{regression_forward.1} parent=11 // pred_check_branch
          %313 = sbr.rel (%p311) target = $region32
        $region31: #{regression_forward.1} parent=11 // pred_region
          _
        $region32: #{regression_forward.1} parent=11 // pred_fallthru
          _
        // Predicated region
        $region33: #{regression_forward.1} parent=11 // pred_check
          %p314 = pneg %p174
        $region34: #{regression_forward.1} parent=11 // pred_check_branch
          %316 = sbr.rel (%p314) target = $region36
        $region35: #{regression_forward.1} parent=11 // pred_region
          _
        $region36: #{regression_forward.1} parent=11 // pred_fallthru
          _
        // Predicated region
        $region37: #{regression_forward.1} parent=11 // pred_check
          %p317 = pneg %p195
        $region38: #{regression_forward.1} parent=11 // pred_check_branch
          %319 = sbr.rel (%p317) target = $region40
        $region39: #{regression_forward.1} parent=11 // pred_region
          _
        $region40: #{regression_forward.1} parent=11 // pred_fallthru
          _
        // Predicated region
        $region41: #{regression_forward.1} parent=11 // pred_check
          %p320 = pneg %p216
        $region42: #{regression_forward.1} parent=11 // pred_check_branch
          %322 = sbr.rel (%p320) target = $region44
        $region43: #{regression_forward.1} parent=11 // pred_region
          _
        $region44: #{regression_forward.1} parent=11 // pred_fallthru
          _
        // Predicated region
        $region45: #{regression_forward.1} parent=11 // pred_check
          %p323 = pneg %p237
        $region46: #{regression_forward.1} parent=11 // pred_check_branch
          %325 = sbr.rel (%p323) target = $region48
        $region47: #{regression_forward.1} parent=11 // pred_region
          _
        $region48: #{regression_forward.1} parent=11 // pred_fallthru
          _
        // Predicated region
        $region49: #{regression_forward.1} parent=11 // pred_check
          %p326 = pneg %p258
        $region50: #{regression_forward.1} parent=11 // pred_check_branch
          %328 = sbr.rel (%p326) target = $region52
        $region51: #{regression_forward.1} parent=11 // pred_region
          _
        $region52: #{regression_forward.1} parent=11 // pred_fallthru
          _
      $region12: #{regression_forward.1} parent=5 // pred_fallthru
        _
      %p329 = scmp.lt.s32.totalorder %s22, 2
      // Predicated region
      $region53: #{regression_forward.1} parent=5 // pred_check
        %p330 = pneg %p329
      $region54: #{regression_forward.1} parent=5 // pred_check_branch
        %332 = sbr.rel (%p330) target = $region56
      $region55: #{regression_forward.1} parent=5 // pred_region
        // Predicated region
        $region57: #{regression_forward.1} parent=55 // pred_check
          %p333 = pneg %p42
        $region58: #{regression_forward.1} parent=55 // pred_check_branch
          %335 = sbr.rel (%p333) target = $region60
        $region59: #{regression_forward.1} parent=55 // pred_region
          %s336 = smul.u32 64, %s22
          %s337 = ssub.s32 65, %s336
          %p338 = scmp.lt.s32.totalorder %s337, 64
          %s339 = scalar_select %p338, %s337, 64
          %s340 = smul.u32 128, %s339
          %p341 = scmp.lt.s32.totalorder %s336, 64
          %s342 = scalar_select %p341, %s336, 64
          %s343 = smul.addr %s342, 8
          %s344 = scalar_lea.vmem %s0, %s343
          %s345 = smul.u32 64, %s22
          %s346 = ssub.s32 65, %s345
          %p347 = scmp.lt.s32.totalorder %s346, 64
          %s348 = scalar_select %p347, %s346, 64
          %s349 = smul.u32 128, %s348
        $region60: #{regression_forward.1} parent=55 // pred_fallthru
          _
      $region56: #{regression_forward.1} parent=5 // pred_fallthru
        _
      %p350 = scmp.le.s32.totalorder 1, %s22
      %p351 = scmp.lt.s32.totalorder %s22, 3
      %p352 = pnand %p350, %p351
      %p353 = pneg %p352
      // Predicated region
      $region61: #{regression_forward.1} parent=5 // pred_check
        _
      $region62: #{regression_forward.1} parent=5 // pred_check_branch
        %355 = sbr.rel (%p352) target = $region64
      $region63: #{regression_forward.1} parent=5 // pred_region
        %s356 = ssub.s32 %s22, 1
        %s357 = smul.u32 64, %s27
        %s358 = ssub.s32 65, %s357
        %p359 = scmp.lt.s32.totalorder %s358, 64
        %s360 = scalar_select %p359, %s358, 64
        %s361 = smul.u32 128, %s360
        %p362 = scmp.lt.s32.totalorder %s357, 64
        %s363 = scalar_select %p362, %s357, 64
        %s364 = smul.addr %s363, 8
        %s365 = scalar_lea.vmem %s0, %s364
        %p366 = pneg %p48
        %p367 = pneg %p45
        %p368 = pneg %p69
        %p369 = pneg %p66
        %p370 = pneg %p90
        %p371 = pneg %p87
        %p372 = pneg %p111
        %p373 = pneg %p108
        %p374 = pneg %p132
        %p375 = pneg %p129
        %p376 = pneg %p153
        %p377 = pneg %p150
        %p378 = pneg %p174
        %p379 = pneg %p171
        %p380 = pneg %p195
        %p381 = pneg %p192
        %p382 = pneg %p216
        %p383 = pneg %p213
        %p384 = pneg %p237
        %p385 = pneg %p234
        %p386 = pneg %p258
        %p387 = pneg %p255
        %p388 = pneg %p284
        %p389 = pneg %p281
        %s390 = sand.u32 %s271, 1
        %s391 = scalar_lea.sflag [#allocation4], %s390
        %s392 = sand.u32 %s271, 1
        %s393 = smul.addr %s392, 4
        %s394 = scalar_lea.vmem [#allocation3], %s393
        %s395 = smul.u32 64, %s27
        %s396 = ssub.s32 65, %s395
        %p397 = scmp.lt.s32.totalorder %s396, 64
        %s398 = scalar_select %p397, %s396, 64
        %s399 = smul.u32 128, %s398
        %p400 = scmp.lt.s32.totalorder %s395, 64
        %s401 = scalar_select %p400, %s395, 64
        %s402 = smul.addr %s401, 8
        %s403 = scalar_lea.vmem %s0, %s402
        %s404 = smul.u32 64, %s27
        %s405 = ssub.s32 65, %s404
        %p406 = scmp.lt.s32.totalorder %s405, 64
        %s407 = scalar_select %p406, %s405, 64
        %s408 = smul.u32 128, %s407
        %s409 = smul.u32 4, %s27
        %s410 = ssub.s32 5, %s409
        %p411 = scmp.lt.s32.totalorder %s410, 4
        %s412 = scalar_select %p411, %s410, 4
        %s413 = smul.u32 16, %s412
        %v415 = vld [vmem:[%s403] sm:$0xff]
        %v416 = vld [vmem:[%s403 + $0x8] sm:$0xff]
        %v417 = vld [vmem:[%s403 + $0x10] sm:$0xff]
        %v418 = vld [vmem:[%s403 + $0x18] sm:$0xff]
        %v419 = vld [vmem:[%s403 + $0x20] sm:$0xff]
        %v420 = vld [vmem:[%s403 + $0x28] sm:$0xff]
        %v421 = vld [vmem:[%s403 + $0x30] sm:$0xff]
        %v422 = vld [vmem:[%s403 + $0x38] sm:$0xff]
        %v423 = vld [vmem:[%s403 + $0x40] sm:$0xff]
        %v424 = vld [vmem:[%s403 + $0x48] sm:$0xff]
        %v425 = vld [vmem:[%s403 + $0x50] sm:$0xff]
        %v426 = vld [vmem:[%s403 + $0x58] sm:$0xff]
        %v427 = vld [vmem:[%s403 + $0x60] sm:$0xff]
        %v428 = vld [vmem:[%s403 + $0x68] sm:$0xff]
        %v429 = vld [vmem:[%s403 + $0x70] sm:$0xff]
        %v430 = vld [vmem:[%s403 + $0x78] sm:$0xff]
        %v431 = vld [vmem:[%s403 + $0x80] sm:$0xff]
        %v432 = vld [vmem:[%s403 + $0x88] sm:$0xff]
        %v433 = vld [vmem:[%s403 + $0x90] sm:$0xff]
        %v434 = vld [vmem:[%s403 + $0x98] sm:$0xff]
        %v435 = vld [vmem:[%s403 + $0xa0] sm:$0xff]
        %v436 = vld [vmem:[%s403 + $0xa8] sm:$0xff]
        %v437 = vld [vmem:[%s403 + $0xb0] sm:$0xff]
        %v438 = vld [vmem:[%s403 + $0xb8] sm:$0xff]
        %v439 = vld [vmem:[%s403 + $0xc0] sm:$0xff]
        %v440 = vld [vmem:[%s403 + $0xc8] sm:$0xff]
        %v441 = vld [vmem:[%s403 + $0xd0] sm:$0xff]
        %v442 = vld [vmem:[%s403 + $0xd8] sm:$0xff]
        %v443 = vld [vmem:[%s403 + $0xe0] sm:$0xff]
        %v444 = vld [vmem:[%s403 + $0xe8] sm:$0xff]
        %v445 = vld [vmem:[%s403 + $0xf0] sm:$0xff]
        %v446 = vld [vmem:[%s403 + $0xf8] sm:$0xff]
        %v447 = vld [vmem:[%s403 + $0x100] sm:$0xff]
        %v448 = vld [vmem:[%s403 + $0x108] sm:$0xff]
        %v449 = vld [vmem:[%s403 + $0x110] sm:$0xff]
        %v450 = vld [vmem:[%s403 + $0x118] sm:$0xff]
        %v451 = vld [vmem:[%s403 + $0x120] sm:$0xff]
        %v452 = vld [vmem:[%s403 + $0x128] sm:$0xff]
        %v453 = vld [vmem:[%s403 + $0x130] sm:$0xff]
        %v454 = vld [vmem:[%s403 + $0x138] sm:$0xff]
        %v455 = vld [vmem:[%s403 + $0x140] sm:$0xff]
        %v456 = vld [vmem:[%s403 + $0x148] sm:$0xff]
        %v457 = vld [vmem:[%s403 + $0x150] sm:$0xff]
        %v458 = vld [vmem:[%s403 + $0x158] sm:$0xff]
        %v459 = vld [vmem:[%s403 + $0x160] sm:$0xff]
        %v460 = vld [vmem:[%s403 + $0x168] sm:$0xff]
        %v461 = vld [vmem:[%s403 + $0x170] sm:$0xff]
        %v462 = vld [vmem:[%s403 + $0x178] sm:$0xff]
        %v463 = vld [vmem:[%s403 + $0x180] sm:$0xff]
        %v464 = vld [vmem:[%s403 + $0x188] sm:$0xff]
        %v465 = vld [vmem:[%s403 + $0x190] sm:$0xff]
        %v466 = vld [vmem:[%s403 + $0x198] sm:$0xff]
        %v467 = vld [vmem:[%s403 + $0x1a0] sm:$0xff]
        %v468 = vld [vmem:[%s403 + $0x1a8] sm:$0xff]
        %v469 = vld [vmem:[%s403 + $0x1b0] sm:$0xff]
        %v470 = vld [vmem:[%s403 + $0x1b8] sm:$0xff]
        %v471 = vld [vmem:[%s403 + $0x1c0] sm:$0xff]
        %v472 = vld [vmem:[%s403 + $0x1c8] sm:$0xff]
        %v473 = vld [vmem:[%s403 + $0x1d0] sm:$0xff]
        %v474 = vld [vmem:[%s403 + $0x1d8] sm:$0xff]
        %v475 = vld [vmem:[%s403 + $0x1e0] sm:$0xff]
        %v476 = vld [vmem:[%s403 + $0x1e8] sm:$0xff]
        %v477 = vld [vmem:[%s403 + $0x1f0] sm:$0xff]
        %v478 = vld [vmem:[%s403 + $0x1f8] sm:$0xff]
        %v479 = vpack.c.bf16 %v416, %v415
        %v480 = vpack.c.bf16 %v418, %v417
        %v481 = vpack.c.bf16 %v420, %v419
        %v482 = vpack.c.bf16 %v422, %v421
        %v483 = vpack.c.bf16 %v424, %v423
        %v484 = vpack.c.bf16 %v426, %v425
        %v485 = vpack.c.bf16 %v428, %v427
        %v486 = vpack.c.bf16 %v430, %v429
        %v487 = vpack.c.bf16 %v432, %v431
        %v488 = vpack.c.bf16 %v434, %v433
        %v489 = vpack.c.bf16 %v436, %v435
        %v490 = vpack.c.bf16 %v438, %v437
        %v491 = vpack.c.bf16 %v440, %v439
        %v492 = vpack.c.bf16 %v442, %v441
        %v493 = vpack.c.bf16 %v444, %v443
        %v494 = vpack.c.bf16 %v446, %v445
        %v495 = vpack.c.bf16 %v448, %v447
        %v496 = vpack.c.bf16 %v450, %v449
        %v497 = vpack.c.bf16 %v452, %v451
        %v498 = vpack.c.bf16 %v454, %v453
        %v499 = vpack.c.bf16 %v456, %v455
        %v500 = vpack.c.bf16 %v458, %v457
        %v501 = vpack.c.bf16 %v460, %v459
        %v502 = vpack.c.bf16 %v462, %v461
        %v503 = vpack.c.bf16 %v464, %v463
        %v504 = vpack.c.bf16 %v466, %v465
        %v505 = vpack.c.bf16 %v468, %v467
        %v506 = vpack.c.bf16 %v470, %v469
        %v507 = vpack.c.bf16 %v472, %v471
        %v508 = vpack.c.bf16 %v474, %v473
        %v509 = vpack.c.bf16 %v476, %v475
        %v510 = vpack.c.bf16 %v478, %v477
        %v511 = vld [vmem:[%s1] sm:$0xf]
        %v512 = vld [vmem:[%s1 + $0x4] sm:$0xf]
        %v513 = vld [vmem:[%s1 + $0x8] sm:$0xf]
        %v514 = vld [vmem:[%s1 + $0xc] sm:$0xf]
        %v515 = vld [vmem:[%s1 + $0x10] sm:$0xf]
        %v516 = vld [vmem:[%s1 + $0x14] sm:$0xf]
        %v517 = vld [vmem:[%s1 + $0x18] sm:$0xf]
        %v518 = vld [vmem:[%s1 + $0x1c] sm:$0xf]
        %v519 = vld [vmem:[%s1 + $0x20] sm:$0xf]
        %v520 = vld [vmem:[%s1 + $0x24] sm:$0xf]
        %v521 = vld [vmem:[%s1 + $0x28] sm:$0xf]
        %v522 = vld [vmem:[%s1 + $0x2c] sm:$0xf]
        %v523 = vld [vmem:[%s1 + $0x30] sm:$0xf]
        %v524 = vld [vmem:[%s1 + $0x34] sm:$0xf]
        %v525 = vld [vmem:[%s1 + $0x38] sm:$0xf]
        %v526 = vld [vmem:[%s1 + $0x3c] sm:$0xf]
        %v527 = vld [vmem:[%s2] sm:$0xff]
        %v528 = vld [vmem:[%s2 + $0x8] sm:$0xff]
        %v529 = vld [vmem:[%s2 + $0x10] sm:$0xff]
        %v530 = vld [vmem:[%s2 + $0x18] sm:$0xff]
        %v531 = vld [vmem:[%s2 + $0x20] sm:$0xff]
        %v532 = vld [vmem:[%s2 + $0x28] sm:$0xff]
        %v533 = vld [vmem:[%s2 + $0x30] sm:$0xff]
        %v534 = vld [vmem:[%s2 + $0x38] sm:$0xff]
        %v535 = vld [vmem:[%s2 + $0x40] sm:$0xff]
        %v536 = vld [vmem:[%s2 + $0x48] sm:$0xff]
        %v537 = vld [vmem:[%s2 + $0x50] sm:$0xff]
        %v538 = vld [vmem:[%s2 + $0x58] sm:$0xff]
        %v539 = vld [vmem:[%s2 + $0x60] sm:$0xff]
        %v540 = vld [vmem:[%s2 + $0x68] sm:$0xff]
        %v541 = vld [vmem:[%s2 + $0x70] sm:$0xff]
        %v542 = vld [vmem:[%s2 + $0x78] sm:$0xff]
        %544 = vset.pattern.permute.xlu0 0
        %545 = vperm.xlu0 %544, %v527
        %v546 = vpop.permute.xlu0 %545
        %549 = vset.pattern.permute.xlu0 0
        %550 = vperm.xlu0 %549, %v528
        %v551 = vpop.permute.xlu0 %550
        %554 = vset.pattern.permute.xlu0 0
        %555 = vperm.xlu0 %554, %v529
        %v556 = vpop.permute.xlu0 %555
        %559 = vset.pattern.permute.xlu0 0
        %560 = vperm.xlu0 %559, %v530
        %v561 = vpop.permute.xlu0 %560
        %564 = vset.pattern.permute.xlu0 0
        %565 = vperm.xlu0 %564, %v531
        %v566 = vpop.permute.xlu0 %565
        %569 = vset.pattern.permute.xlu0 0
        %570 = vperm.xlu0 %569, %v532
        %v571 = vpop.permute.xlu0 %570
        %574 = vset.pattern.permute.xlu0 0
        %575 = vperm.xlu0 %574, %v533
        %v576 = vpop.permute.xlu0 %575
        %579 = vset.pattern.permute.xlu0 0
        %580 = vperm.xlu0 %579, %v534
        %v581 = vpop.permute.xlu0 %580
        %584 = vset.pattern.permute.xlu0 0
        %585 = vperm.xlu0 %584, %v535
        %v586 = vpop.permute.xlu0 %585
        %589 = vset.pattern.permute.xlu0 0
        %590 = vperm.xlu0 %589, %v536
        %v591 = vpop.permute.xlu0 %590
        %594 = vset.pattern.permute.xlu0 0
        %595 = vperm.xlu0 %594, %v537
        %v596 = vpop.permute.xlu0 %595
        %599 = vset.pattern.permute.xlu0 0
        %600 = vperm.xlu0 %599, %v538
        %v601 = vpop.permute.xlu0 %600
        %604 = vset.pattern.permute.xlu0 0
        %605 = vperm.xlu0 %604, %v539
        %v606 = vpop.permute.xlu0 %605
        %609 = vset.pattern.permute.xlu0 0
        %610 = vperm.xlu0 %609, %v540
        %v611 = vpop.permute.xlu0 %610
        %614 = vset.pattern.permute.xlu0 0
        %615 = vperm.xlu0 %614, %v541
        %v616 = vpop.permute.xlu0 %615
        %619 = vset.pattern.permute.xlu0 0
        %620 = vperm.xlu0 %619, %v542
        %v621 = vpop.permute.xlu0 %620
        %v639 = vunpack.c.l.b16 %v511
        %v640 = vunpack.c.l.b16 %v512
        %v641 = vunpack.c.l.b16 %v513
        %v642 = vunpack.c.l.b16 %v514
        %v643 = vunpack.c.l.b16 %v515
        %v644 = vunpack.c.l.b16 %v516
        %v645 = vunpack.c.l.b16 %v517
        %v646 = vunpack.c.l.b16 %v518
        %v647 = vunpack.c.l.b16 %v519
        %v648 = vunpack.c.l.b16 %v520
        %v649 = vunpack.c.l.b16 %v521
        %v650 = vunpack.c.l.b16 %v522
        %v651 = vunpack.c.l.b16 %v523
        %v652 = vunpack.c.l.b16 %v524
        %v653 = vunpack.c.l.b16 %v525
        %v654 = vunpack.c.l.b16 %v526
        %v655 = vpack.c.b16 %v640, %v639
        %v656 = vpack.c.b16 %v642, %v641
        %v657 = vpack.c.b16 %v644, %v643
        %v658 = vpack.c.b16 %v646, %v645
        %v659 = vpack.c.b16 %v648, %v647
        %v660 = vpack.c.b16 %v650, %v649
        %v661 = vpack.c.b16 %v652, %v651
        %v662 = vpack.c.b16 %v654, %v653
        %vm663 = vcmask 203776
        %v665 = vsel %vm663, %v655, 0
        %v668 = vsel %vm663, %v656, 0
        %v671 = vsel %vm663, %v657, 0
        %v674 = vsel %vm663, %v658, 0
        %v677 = vsel %vm663, %v659, 0
        %v680 = vsel %vm663, %v660, 0
        %v683 = vsel %vm663, %v661, 0
        %v686 = vsel %vm663, %v662, 0
        %v689 = vsel %vm663, %v479, 0
        %v692 = vsel %vm663, %v480, 0
        %v695 = vsel %vm663, %v481, 0
        %v698 = vsel %vm663, %v482, 0
        %v701 = vsel %vm663, %v483, 0
        %v704 = vsel %vm663, %v484, 0
        %v707 = vsel %vm663, %v485, 0
        %v710 = vsel %vm663, %v486, 0
        %v713 = vsel %vm663, %v487, 0
        %v716 = vsel %vm663, %v488, 0
        %v719 = vsel %vm663, %v489, 0
        %v722 = vsel %vm663, %v490, 0
        %v725 = vsel %vm663, %v491, 0
        %v728 = vsel %vm663, %v492, 0
        %v731 = vsel %vm663, %v493, 0
        %v734 = vsel %vm663, %v494, 0
        %v737 = vsel %vm663, %v495, 0
        %v740 = vsel %vm663, %v496, 0
        %v743 = vsel %vm663, %v497, 0
        %v746 = vsel %vm663, %v498, 0
        %v749 = vsel %vm663, %v499, 0
        %v752 = vsel %vm663, %v500, 0
        %v755 = vsel %vm663, %v501, 0
        %v758 = vsel %vm663, %v502, 0
        %v761 = vsel %vm663, %v503, 0
        %v764 = vsel %vm663, %v504, 0
        %v767 = vsel %vm663, %v505, 0
        %v770 = vsel %vm663, %v506, 0
        %v773 = vsel %vm663, %v507, 0
        %v776 = vsel %vm663, %v508, 0
        %v779 = vsel %vm663, %v509, 0
        %v782 = vsel %vm663, %v510, 0
        %784 = vmatprep.subr.bf16.mxu0 0
        %785 = vmatpush1.bf16.xpose.msra.mxu0 %v689
        %786 = vmatprep.subr.bf16.mxu0 0
        %787 = vmatpush1.bf16.xpose.msra.mxu0 %v692
        %788 = vmatprep.subr.bf16.mxu0 0
        %789 = vmatpush1.bf16.xpose.msra.mxu0 %v695
        %790 = vmatprep.subr.bf16.mxu0 0
        %791 = vmatpush1.bf16.xpose.msra.mxu0 %v698
        %792 = vmatprep.subr.bf16.mxu0 0
        %793 = vmatpush1.bf16.xpose.msra.mxu0 %v701
        %794 = vmatprep.subr.bf16.mxu0 0
        %795 = vmatpush1.bf16.xpose.msra.mxu0 %v704
        %796 = vmatprep.subr.bf16.mxu0 0
        %797 = vmatpush1.bf16.xpose.msra.mxu0 %v707
        %798 = vmatprep.subr.bf16.mxu0 0
        %799 = vmatpush1.bf16.xpose.msra.mxu0 %v710
        %800 = vmatprep.subr.bf16.mxu0 0
        %801 = vmatpush1.bf16.xpose.msra.mxu0 %v713
        %802 = vmatprep.subr.bf16.mxu0 0
        %803 = vmatpush1.bf16.xpose.msra.mxu0 %v716
        %804 = vmatprep.subr.bf16.mxu0 0
        %805 = vmatpush1.bf16.xpose.msra.mxu0 %v719
        %806 = vmatprep.subr.bf16.mxu0 0
        %807 = vmatpush1.bf16.xpose.msra.mxu0 %v722
        %808 = vmatprep.subr.bf16.mxu0 0
        %809 = vmatpush1.bf16.xpose.msra.mxu0 %v725
        %810 = vmatprep.subr.bf16.mxu0 0
        %811 = vmatpush1.bf16.xpose.msra.mxu0 %v728
        %812 = vmatprep.subr.bf16.mxu0 0
        %813 = vmatpush1.bf16.xpose.msra.mxu0 %v731
        %814 = vmatprep.subr.bf16.mxu0 0
        %815 = vmatpush1.bf16.xpose.msra.mxu0 %v734
        %816 = vmatprep.mubr.bf16.mxu0 0
        %817 = vmatmul.mubr.bf16.gmra.mrb[0].mxu0 %v665
        %v818 = vpop.f32.mrb[0].mxu0
        %v819 = vadd.f32 %v546, %v818
        %v820 = vpop.f32.mrb[0].mxu0
        %v821 = vadd.f32 %v546, %v820
        %v822 = vpop.f32.mrb[0].mxu0
        %v823 = vadd.f32 %v551, %v822
        %v824 = vpop.f32.mrb[0].mxu0
        %v825 = vadd.f32 %v551, %v824
        %826 = vmatprep.mubr.bf16.mxu0 0
        %827 = vmatmul.mubr.bf16.gmra.mrb[0].mxu0 %v668
        %v828 = vpop.f32.mrb[0].mxu0
        %v829 = vadd.f32 %v556, %v828
        %v830 = vpop.f32.mrb[0].mxu0
        %v831 = vadd.f32 %v556, %v830
        %v832 = vpop.f32.mrb[0].mxu0
        %v833 = vadd.f32 %v561, %v832
        %v834 = vpop.f32.mrb[0].mxu0
        %v835 = vadd.f32 %v561, %v834
        %836 = vmatprep.mubr.bf16.mxu0 0
        %837 = vmatmul.mubr.bf16.gmra.mrb[0].mxu0 %v671
        %v838 = vpop.f32.mrb[0].mxu0
        %v839 = vadd.f32 %v566, %v838
        %v840 = vpop.f32.mrb[0].mxu0
        %v841 = vadd.f32 %v566, %v840
        %v842 = vpop.f32.mrb[0].mxu0
        %v843 = vadd.f32 %v571, %v842
        %v844 = vpop.f32.mrb[0].mxu0
        %v845 = vadd.f32 %v571, %v844
        %846 = vmatprep.mubr.bf16.mxu0 0
        %847 = vmatmul.mubr.bf16.gmra.mrb[0].mxu0 %v674
        %v848 = vpop.f32.mrb[0].mxu0
        %v849 = vadd.f32 %v576, %v848
        %v850 = vpop.f32.mrb[0].mxu0
        %v851 = vadd.f32 %v576, %v850
        %v852 = vpop.f32.mrb[0].mxu0
        %v853 = vadd.f32 %v581, %v852
        %v854 = vpop.f32.mrb[0].mxu0
        %v855 = vadd.f32 %v581, %v854
        %856 = vmatprep.mubr.bf16.mxu0 0
        %857 = vmatmul.mubr.bf16.gmra.mrb[0].mxu0 %v677
        %v858 = vpop.f32.mrb[0].mxu0
        %v859 = vadd.f32 %v586, %v858
        %v860 = vpop.f32.mrb[0].mxu0
        %v861 = vadd.f32 %v586, %v860
        %v862 = vpop.f32.mrb[0].mxu0
        %v863 = vadd.f32 %v591, %v862
        %v864 = vpop.f32.mrb[0].mxu0
        %v865 = vadd.f32 %v591, %v864
        %866 = vmatprep.mubr.bf16.mxu0 0
        %867 = vmatmul.mubr.bf16.gmra.mrb[0].mxu0 %v680
        %v868 = vpop.f32.mrb[0].mxu0
        %v869 = vadd.f32 %v596, %v868
        %v870 = vpop.f32.mrb[0].mxu0
        %v871 = vadd.f32 %v596, %v870
        %v872 = vpop.f32.mrb[0].mxu0
        %v873 = vadd.f32 %v601, %v872
        %v874 = vpop.f32.mrb[0].mxu0
        %v875 = vadd.f32 %v601, %v874
        %876 = vmatprep.mubr.bf16.mxu0 0
        %877 = vmatmul.mubr.bf16.gmra.mrb[0].mxu0 %v683
        %v878 = vpop.f32.mrb[0].mxu0
        %v879 = vadd.f32 %v606, %v878
        %v880 = vpop.f32.mrb[0].mxu0
        %v881 = vadd.f32 %v606, %v880
        %v882 = vpop.f32.mrb[0].mxu0
        %v883 = vadd.f32 %v611, %v882
        %v884 = vpop.f32.mrb[0].mxu0
        %v885 = vadd.f32 %v611, %v884
        %886 = vmatprep.mubr.bf16.mxu0 0
        %887 = vmatmul.mubr.bf16.gmra.mrb[0].mxu0 %v686
        %v888 = vpop.f32.mrb[0].mxu0
        %v889 = vadd.f32 %v616, %v888
        %v890 = vpop.f32.mrb[0].mxu0
        %v891 = vadd.f32 %v616, %v890
        %v892 = vpop.f32.mrb[0].mxu0
        %v893 = vadd.f32 %v621, %v892
        %v894 = vpop.f32.mrb[0].mxu0
        %v895 = vadd.f32 %v621, %v894
        %896 = vdwg.mxu0
        %897 = vmatprep.subr.bf16.mxu0 0
        %898 = vmatpush1.bf16.xpose.msra.mxu0 %v737
        %899 = vmatprep.subr.bf16.mxu0 0
        %900 = vmatpush1.bf16.xpose.msra.mxu0 %v740
        %901 = vmatprep.subr.bf16.mxu0 0
        %902 = vmatpush1.bf16.xpose.msra.mxu0 %v743
        %903 = vmatprep.subr.bf16.mxu0 0
        %904 = vmatpush1.bf16.xpose.msra.mxu0 %v746
        %905 = vmatprep.subr.bf16.mxu0 0
        %906 = vmatpush1.bf16.xpose.msra.mxu0 %v749
        %907 = vmatprep.subr.bf16.mxu0 0
        %908 = vmatpush1.bf16.xpose.msra.mxu0 %v752
        %909 = vmatprep.subr.bf16.mxu0 0
        %910 = vmatpush1.bf16.xpose.msra.mxu0 %v755
        %911 = vmatprep.subr.bf16.mxu0 0
        %912 = vmatpush1.bf16.xpose.msra.mxu0 %v758
        %913 = vmatprep.subr.bf16.mxu0 0
        %914 = vmatpush1.bf16.xpose.msra.mxu0 %v761
        %915 = vmatprep.subr.bf16.mxu0 0
        %916 = vmatpush1.bf16.xpose.msra.mxu0 %v764
        %917 = vmatprep.subr.bf16.mxu0 0
        %918 = vmatpush1.bf16.xpose.msra.mxu0 %v767
        %919 = vmatprep.subr.bf16.mxu0 0
        %920 = vmatpush1.bf16.xpose.msra.mxu0 %v770
        %921 = vmatprep.subr.bf16.mxu0 0
        %922 = vmatpush1.bf16.xpose.msra.mxu0 %v773
        %923 = vmatprep.subr.bf16.mxu0 0
        %924 = vmatpush1.bf16.xpose.msra.mxu0 %v776
        %925 = vmatprep.subr.bf16.mxu0 0
        %926 = vmatpush1.bf16.xpose.msra.mxu0 %v779
        %927 = vmatprep.subr.bf16.mxu0 0
        %928 = vmatpush1.bf16.xpose.msra.mxu0 %v782
        %929 = vmatprep.mubr.bf16.mxu0 0
        %930 = vmatmul.mubr.bf16.gmra.mrb[0].mxu0 %v665
        %v931 = vpop.f32.mrb[0].mxu0
        %v932 = vadd.f32 %v546, %v931
        %v933 = vpop.f32.mrb[0].mxu0
        %v934 = vadd.f32 %v546, %v933
        %v935 = vpop.f32.mrb[0].mxu0
        %v936 = vadd.f32 %v551, %v935
        %v937 = vpop.f32.mrb[0].mxu0
        %v938 = vadd.f32 %v551, %v937
        %939 = vmatprep.mubr.bf16.mxu0 0
        %940 = vmatmul.mubr.bf16.gmra.mrb[0].mxu0 %v668
        %v941 = vpop.f32.mrb[0].mxu0
        %v942 = vadd.f32 %v556, %v941
        %v943 = vpop.f32.mrb[0].mxu0
        %v944 = vadd.f32 %v556, %v943
        %v945 = vpop.f32.mrb[0].mxu0
        %v946 = vadd.f32 %v561, %v945
        %v947 = vpop.f32.mrb[0].mxu0
        %v948 = vadd.f32 %v561, %v947
        %949 = vmatprep.mubr.bf16.mxu0 0
        %950 = vmatmul.mubr.bf16.gmra.mrb[0].mxu0 %v671
        %v951 = vpop.f32.mrb[0].mxu0
        %v952 = vadd.f32 %v566, %v951
        %v953 = vpop.f32.mrb[0].mxu0
        %v954 = vadd.f32 %v566, %v953
        %v955 = vpop.f32.mrb[0].mxu0
        %v956 = vadd.f32 %v571, %v955
        %v957 = vpop.f32.mrb[0].mxu0
        %v958 = vadd.f32 %v571, %v957
        %959 = vmatprep.mubr.bf16.mxu0 0
        %960 = vmatmul.mubr.bf16.gmra.mrb[0].mxu0 %v674
        %v961 = vpop.f32.mrb[0].mxu0
        %v962 = vadd.f32 %v576, %v961
        %v963 = vpop.f32.mrb[0].mxu0
        %v964 = vadd.f32 %v576, %v963
        %v965 = vpop.f32.mrb[0].mxu0
        %v966 = vadd.f32 %v581, %v965
        %v967 = vpop.f32.mrb[0].mxu0
        %v968 = vadd.f32 %v581, %v967
        %969 = vmatprep.mubr.bf16.mxu0 0
        %970 = vmatmul.mubr.bf16.gmra.mrb[0].mxu0 %v677
        %v971 = vpop.f32.mrb[0].mxu0
        %v972 = vadd.f32 %v586, %v971
        %v973 = vpop.f32.mrb[0].mxu0
        %v974 = vadd.f32 %v586, %v973
        %v975 = vpop.f32.mrb[0].mxu0
        %v976 = vadd.f32 %v591, %v975
        %v977 = vpop.f32.mrb[0].mxu0
        %v978 = vadd.f32 %v591, %v977
        %979 = vmatprep.mubr.bf16.mxu0 0
        %980 = vmatmul.mubr.bf16.gmra.mrb[0].mxu0 %v680
        %v981 = vpop.f32.mrb[0].mxu0
        %v982 = vadd.f32 %v596, %v981
        %v983 = vpop.f32.mrb[0].mxu0
        %v984 = vadd.f32 %v596, %v983
        %v985 = vpop.f32.mrb[0].mxu0
        %v986 = vadd.f32 %v601, %v985
        %v987 = vpop.f32.mrb[0].mxu0
        %v988 = vadd.f32 %v601, %v987
        %989 = vmatprep.mubr.bf16.mxu0 0
        %990 = vmatmul.mubr.bf16.gmra.mrb[0].mxu0 %v683
        %v991 = vpop.f32.mrb[0].mxu0
        %v992 = vadd.f32 %v606, %v991
        %v993 = vpop.f32.mrb[0].mxu0
        %v994 = vadd.f32 %v606, %v993
        %v995 = vpop.f32.mrb[0].mxu0
        %v996 = vadd.f32 %v611, %v995
        %v997 = vpop.f32.mrb[0].mxu0
        %v998 = vadd.f32 %v611, %v997
        %999 = vmatprep.mubr.bf16.mxu0 0
        %1000 = vmatmul.mubr.bf16.gmra.mrb[0].mxu0 %v686
        %v1001 = vpop.f32.mrb[0].mxu0
        %v1002 = vadd.f32 %v616, %v1001
        %v1003 = vpop.f32.mrb[0].mxu0
        %v1004 = vadd.f32 %v616, %v1003
        %v1005 = vpop.f32.mrb[0].mxu0
        %v1006 = vadd.f32 %v621, %v1005
        %v1007 = vpop.f32.mrb[0].mxu0
        %v1008 = vadd.f32 %v621, %v1007
        %1009 = vdwg.mxu0
        %v1010 = vmul.f32 %v819, 0.01
        %v1011 = vmul.f32 %v821, 0.01
        %v1012 = vmul.f32 %v932, 0.01
        %v1013 = vmul.f32 %v934, 0.01
        %v1014 = vmul.f32 %v823, 0.01
        %v1015 = vmul.f32 %v825, 0.01
        %v1016 = vmul.f32 %v936, 0.01
        %v1017 = vmul.f32 %v938, 0.01
        %v1018 = vmul.f32 %v829, 0.01
        %v1019 = vmul.f32 %v831, 0.01
        %v1020 = vmul.f32 %v942, 0.01
        %v1021 = vmul.f32 %v944, 0.01
        %v1022 = vmul.f32 %v833, 0.01
        %v1023 = vmul.f32 %v835, 0.01
        %v1024 = vmul.f32 %v946, 0.01
        %v1025 = vmul.f32 %v948, 0.01
        %v1026 = vmul.f32 %v839, 0.01
        %v1027 = vmul.f32 %v841, 0.01
        %v1028 = vmul.f32 %v952, 0.01
        %v1029 = vmul.f32 %v954, 0.01
        %v1030 = vmul.f32 %v843, 0.01
        %v1031 = vmul.f32 %v845, 0.01
        %v1032 = vmul.f32 %v956, 0.01
        %v1033 = vmul.f32 %v958, 0.01
        %v1034 = vmul.f32 %v849, 0.01
        %v1035 = vmul.f32 %v851, 0.01
        %v1036 = vmul.f32 %v962, 0.01
        %v1037 = vmul.f32 %v964, 0.01
        %v1038 = vmul.f32 %v853, 0.01
        %v1039 = vmul.f32 %v855, 0.01
        %v1040 = vmul.f32 %v966, 0.01
        %v1041 = vmul.f32 %v968, 0.01
        %v1042 = vmul.f32 %v859, 0.01
        %v1043 = vmul.f32 %v861, 0.01
        %v1044 = vmul.f32 %v972, 0.01
        %v1045 = vmul.f32 %v974, 0.01
        %v1046 = vmul.f32 %v863, 0.01
        %v1047 = vmul.f32 %v865, 0.01
        %v1048 = vmul.f32 %v976, 0.01
        %v1049 = vmul.f32 %v978, 0.01
        %v1050 = vmul.f32 %v869, 0.01
        %v1051 = vmul.f32 %v871, 0.01
        %v1052 = vmul.f32 %v982, 0.01
        %v1053 = vmul.f32 %v984, 0.01
        %v1054 = vmul.f32 %v873, 0.01
        %v1055 = vmul.f32 %v875, 0.01
        %v1056 = vmul.f32 %v986, 0.01
        %v1057 = vmul.f32 %v988, 0.01
        %v1058 = vmul.f32 %v879, 0.01
        %v1059 = vmul.f32 %v881, 0.01
        %v1060 = vmul.f32 %v992, 0.01
        %v1061 = vmul.f32 %v994, 0.01
        %v1062 = vmul.f32 %v883, 0.01
        %v1063 = vmul.f32 %v885, 0.01
        %v1064 = vmul.f32 %v996, 0.01
        %v1065 = vmul.f32 %v998, 0.01
        %v1066 = vmul.f32 %v889, 0.01
        %v1067 = vmul.f32 %v891, 0.01
        %v1068 = vmul.f32 %v1002, 0.01
        %v1069 = vmul.f32 %v1004, 0.01
        %v1070 = vmul.f32 %v893, 0.01
        %v1071 = vmul.f32 %v895, 0.01
        %v1072 = vmul.f32 %v1006, 0.01
        %v1073 = vmul.f32 %v1008, 0.01
        %v1074 = vmax.f32 %v819, %v1010
        %v1075 = vmax.f32 %v821, %v1011
        %v1076 = vmax.f32 %v932, %v1012
        %v1077 = vmax.f32 %v934, %v1013
        %v1078 = vmax.f32 %v823, %v1014
        %v1079 = vmax.f32 %v825, %v1015
        %v1080 = vmax.f32 %v936, %v1016
        %v1081 = vmax.f32 %v938, %v1017
        %v1082 = vmax.f32 %v829, %v1018
        %v1083 = vmax.f32 %v831, %v1019
        %v1084 = vmax.f32 %v942, %v1020
        %v1085 = vmax.f32 %v944, %v1021
        %v1086 = vmax.f32 %v833, %v1022
        %v1087 = vmax.f32 %v835, %v1023
        %v1088 = vmax.f32 %v946, %v1024
        %v1089 = vmax.f32 %v948, %v1025
        %v1090 = vmax.f32 %v839, %v1026
        %v1091 = vmax.f32 %v841, %v1027
        %v1092 = vmax.f32 %v952, %v1028
        %v1093 = vmax.f32 %v954, %v1029
        %v1094 = vmax.f32 %v843, %v1030
        %v1095 = vmax.f32 %v845, %v1031
        %v1096 = vmax.f32 %v956, %v1032
        %v1097 = vmax.f32 %v958, %v1033
        %v1098 = vmax.f32 %v849, %v1034
        %v1099 = vmax.f32 %v851, %v1035
        %v1100 = vmax.f32 %v962, %v1036
        %v1101 = vmax.f32 %v964, %v1037
        %v1102 = vmax.f32 %v853, %v1038
        %v1103 = vmax.f32 %v855, %v1039
        %v1104 = vmax.f32 %v966, %v1040
        %v1105 = vmax.f32 %v968, %v1041
        %v1106 = vmax.f32 %v859, %v1042
        %v1107 = vmax.f32 %v861, %v1043
        %v1108 = vmax.f32 %v972, %v1044
        %v1109 = vmax.f32 %v974, %v1045
        %v1110 = vmax.f32 %v863, %v1046
        %v1111 = vmax.f32 %v865, %v1047
        %v1112 = vmax.f32 %v976, %v1048
        %v1113 = vmax.f32 %v978, %v1049
        %v1114 = vmax.f32 %v869, %v1050
        %v1115 = vmax.f32 %v871, %v1051
        %v1116 = vmax.f32 %v982, %v1052
        %v1117 = vmax.f32 %v984, %v1053
        %v1118 = vmax.f32 %v873, %v1054
        %v1119 = vmax.f32 %v875, %v1055
        %v1120 = vmax.f32 %v986, %v1056
        %v1121 = vmax.f32 %v988, %v1057
        %v1122 = vmax.f32 %v879, %v1058
        %v1123 = vmax.f32 %v881, %v1059
        %v1124 = vmax.f32 %v992, %v1060
        %v1125 = vmax.f32 %v994, %v1061
        %v1126 = vmax.f32 %v883, %v1062
        %v1127 = vmax.f32 %v885, %v1063
        %v1128 = vmax.f32 %v996, %v1064
        %v1129 = vmax.f32 %v998, %v1065
        %v1130 = vmax.f32 %v889, %v1066
        %v1131 = vmax.f32 %v891, %v1067
        %v1132 = vmax.f32 %v1002, %v1068
        %v1133 = vmax.f32 %v1004, %v1069
        %v1134 = vmax.f32 %v893, %v1070
        %v1135 = vmax.f32 %v895, %v1071
        %v1136 = vmax.f32 %v1006, %v1072
        %v1137 = vmax.f32 %v1008, %v1073
        %v1138 = vpack.c.bf16 %v1078, %v1074
        %v1139 = vpack.c.bf16 %v1079, %v1075
        %v1140 = vpack.c.bf16 %v1080, %v1076
        %v1141 = vpack.c.bf16 %v1081, %v1077
        %v1142 = vpack.c.bf16 %v1086, %v1082
        %v1143 = vpack.c.bf16 %v1087, %v1083
        %v1144 = vpack.c.bf16 %v1088, %v1084
        %v1145 = vpack.c.bf16 %v1089, %v1085
        %v1146 = vpack.c.bf16 %v1094, %v1090
        %v1147 = vpack.c.bf16 %v1095, %v1091
        %v1148 = vpack.c.bf16 %v1096, %v1092
        %v1149 = vpack.c.bf16 %v1097, %v1093
        %v1150 = vpack.c.bf16 %v1102, %v1098
        %v1151 = vpack.c.bf16 %v1103, %v1099
        %v1152 = vpack.c.bf16 %v1104, %v1100
        %v1153 = vpack.c.bf16 %v1105, %v1101
        %v1154 = vpack.c.bf16 %v1110, %v1106
        %v1155 = vpack.c.bf16 %v1111, %v1107
        %v1156 = vpack.c.bf16 %v1112, %v1108
        %v1157 = vpack.c.bf16 %v1113, %v1109
        %v1158 = vpack.c.bf16 %v1118, %v1114
        %v1159 = vpack.c.bf16 %v1119, %v1115
        %v1160 = vpack.c.bf16 %v1120, %v1116
        %v1161 = vpack.c.bf16 %v1121, %v1117
        %v1162 = vpack.c.bf16 %v1126, %v1122
        %v1163 = vpack.c.bf16 %v1127, %v1123
        %v1164 = vpack.c.bf16 %v1128, %v1124
        %v1165 = vpack.c.bf16 %v1129, %v1125
        %v1166 = vpack.c.bf16 %v1134, %v1130
        %v1167 = vpack.c.bf16 %v1135, %v1131
        %v1168 = vpack.c.bf16 %v1136, %v1132
        %v1169 = vpack.c.bf16 %v1137, %v1133
        %v1170 = vld [vmem:[%s3] sm:$0xf]
        %v1171 = vld [vmem:[%s3 + $0x4] sm:$0xf]
        %v1172 = vld [vmem:[%s3 + $0x8] sm:$0xf]
        %v1173 = vld [vmem:[%s3 + $0xc] sm:$0xf]
        %v1174 = vld [vmem:[%s3 + $0x10] sm:$0xf]
        %v1175 = vld [vmem:[%s3 + $0x14] sm:$0xf]
        %v1176 = vld [vmem:[%s3 + $0x18] sm:$0xf]
        %v1177 = vld [vmem:[%s3 + $0x1c] sm:$0xf]
        %v1178 = vld [vmem:[%s3 + $0x20] sm:$0xf]
        %v1179 = vld [vmem:[%s3 + $0x24] sm:$0xf]
        %v1180 = vld [vmem:[%s3 + $0x28] sm:$0xf]
        %v1181 = vld [vmem:[%s3 + $0x2c] sm:$0xf]
        %v1182 = vld [vmem:[%s3 + $0x30] sm:$0xf]
        %v1183 = vld [vmem:[%s3 + $0x34] sm:$0xf]
        %v1184 = vld [vmem:[%s3 + $0x38] sm:$0xf]
        %v1185 = vld [vmem:[%s3 + $0x3c] sm:$0xf]
        %v1186 = vld [vmem:[%s4] sm:$0xff]
        %v1187 = vld [vmem:[%s4 + $0x8] sm:$0xff]
        %v1188 = vld [vmem:[%s4 + $0x10] sm:$0xff]
        %v1189 = vld [vmem:[%s4 + $0x18] sm:$0xff]
        %v1190 = vld [vmem:[%s4 + $0x20] sm:$0xff]
        %v1191 = vld [vmem:[%s4 + $0x28] sm:$0xff]
        %v1192 = vld [vmem:[%s4 + $0x30] sm:$0xff]
        %v1193 = vld [vmem:[%s4 + $0x38] sm:$0xff]
        %v1194 = vld [vmem:[%s4 + $0x40] sm:$0xff]
        %v1195 = vld [vmem:[%s4 + $0x48] sm:$0xff]
        %v1196 = vld [vmem:[%s4 + $0x50] sm:$0xff]
        %v1197 = vld [vmem:[%s4 + $0x58] sm:$0xff]
        %v1198 = vld [vmem:[%s4 + $0x60] sm:$0xff]
        %v1199 = vld [vmem:[%s4 + $0x68] sm:$0xff]
        %v1200 = vld [vmem:[%s4 + $0x70] sm:$0xff]
        %v1201 = vld [vmem:[%s4 + $0x78] sm:$0xff]
        %1203 = vset.pattern.permute.xlu0 0
        %1204 = vperm.xlu0 %1203, %v1186
        %v1205 = vpop.permute.xlu0 %1204
        %1208 = vset.pattern.permute.xlu0 0
        %1209 = vperm.xlu0 %1208, %v1187
        %v1210 = vpop.permute.xlu0 %1209
        %1213 = vset.pattern.permute.xlu0 0
        %1214 = vperm.xlu0 %1213, %v1188
        %v1215 = vpop.permute.xlu0 %1214
        %1218 = vset.pattern.permute.xlu0 0
        %1219 = vperm.xlu0 %1218, %v1189
        %v1220 = vpop.permute.xlu0 %1219
        %1223 = vset.pattern.permute.xlu0 0
        %1224 = vperm.xlu0 %1223, %v1190
        %v1225 = vpop.permute.xlu0 %1224
        %1228 = vset.pattern.permute.xlu0 0
        %1229 = vperm.xlu0 %1228, %v1191
        %v1230 = vpop.permute.xlu0 %1229
        %1233 = vset.pattern.permute.xlu0 0
        %1234 = vperm.xlu0 %1233, %v1192
        %v1235 = vpop.permute.xlu0 %1234
        %1238 = vset.pattern.permute.xlu0 0
        %1239 = vperm.xlu0 %1238, %v1193
        %v1240 = vpop.permute.xlu0 %1239
        %1243 = vset.pattern.permute.xlu0 0
        %1244 = vperm.xlu0 %1243, %v1194
        %v1245 = vpop.permute.xlu0 %1244
        %1248 = vset.pattern.permute.xlu0 0
        %1249 = vperm.xlu0 %1248, %v1195
        %v1250 = vpop.permute.xlu0 %1249
        %1253 = vset.pattern.permute.xlu0 0
        %1254 = vperm.xlu0 %1253, %v1196
        %v1255 = vpop.permute.xlu0 %1254
        %1258 = vset.pattern.permute.xlu0 0
        %1259 = vperm.xlu0 %1258, %v1197
        %v1260 = vpop.permute.xlu0 %1259
        %1263 = vset.pattern.permute.xlu0 0
        %1264 = vperm.xlu0 %1263, %v1198
        %v1265 = vpop.permute.xlu0 %1264
        %1268 = vset.pattern.permute.xlu0 0
        %1269 = vperm.xlu0 %1268, %v1199
        %v1270 = vpop.permute.xlu0 %1269
        %1273 = vset.pattern.permute.xlu0 0
        %1274 = vperm.xlu0 %1273, %v1200
        %v1275 = vpop.permute.xlu0 %1274
        %1278 = vset.pattern.permute.xlu0 0
        %1279 = vperm.xlu0 %1278, %v1201
        %v1280 = vpop.permute.xlu0 %1279
        %v1298 = vunpack.c.l.b16 %v1170
        %v1299 = vunpack.c.l.b16 %v1171
        %v1300 = vunpack.c.l.b16 %v1172
        %v1301 = vunpack.c.l.b16 %v1173
        %v1302 = vunpack.c.l.b16 %v1174
        %v1303 = vunpack.c.l.b16 %v1175
        %v1304 = vunpack.c.l.b16 %v1176
        %v1305 = vunpack.c.l.b16 %v1177
        %v1306 = vunpack.c.l.b16 %v1178
        %v1307 = vunpack.c.l.b16 %v1179
        %v1308 = vunpack.c.l.b16 %v1180
        %v1309 = vunpack.c.l.b16 %v1181
        %v1310 = vunpack.c.l.b16 %v1182
        %v1311 = vunpack.c.l.b16 %v1183
        %v1312 = vunpack.c.l.b16 %v1184
        %v1313 = vunpack.c.l.b16 %v1185
        %v1314 = vpack.c.b16 %v1299, %v1298
        %v1315 = vpack.c.b16 %v1301, %v1300
        %v1316 = vpack.c.b16 %v1303, %v1302
        %v1317 = vpack.c.b16 %v1305, %v1304
        %v1318 = vpack.c.b16 %v1307, %v1306
        %v1319 = vpack.c.b16 %v1309, %v1308
        %v1320 = vpack.c.b16 %v1311, %v1310
        %v1321 = vpack.c.b16 %v1313, %v1312
        %1330 = vmatprep.subr.bf16.mxu0 %v1139
        %1331 = vmatpush1.bf16.msra.mxu0 %v1138
        %1332 = vmatprep.subr.bf16.mxu0 %v1143
        %1333 = vmatpush1.bf16.msra.mxu0 %v1142
        %1334 = vmatprep.subr.bf16.mxu0 %v1147
        %1335 = vmatpush1.bf16.msra.mxu0 %v1146
        %1336 = vmatprep.subr.bf16.mxu0 %v1151
        %1337 = vmatpush1.bf16.msra.mxu0 %v1150
        %1338 = vmatprep.subr.bf16.mxu0 %v1155
        %1339 = vmatpush1.bf16.msra.mxu0 %v1154
        %1340 = vmatprep.subr.bf16.mxu0 %v1159
        %1341 = vmatpush1.bf16.msra.mxu0 %v1158
        %1342 = vmatprep.subr.bf16.mxu0 %v1163
        %1343 = vmatpush1.bf16.msra.mxu0 %v1162
        %1344 = vmatprep.subr.bf16.mxu0 %v1167
        %1345 = vmatpush1.bf16.msra.mxu0 %v1166
        %1346 = vmatprep.subr.bf16.mxu0 0
        %1347 = vmatpush1.bf16.msra.mxu0 0
        %1348 = vmatprep.subr.bf16.mxu0 0
        %1349 = vmatpush1.bf16.msra.mxu0 0
        %1350 = vmatprep.subr.bf16.mxu0 0
        %1351 = vmatpush1.bf16.msra.mxu0 0
        %1352 = vmatprep.subr.bf16.mxu0 0
        %1353 = vmatpush1.bf16.msra.mxu0 0
        %1354 = vmatprep.subr.bf16.mxu0 0
        %1355 = vmatpush1.bf16.msra.mxu0 0
        %1356 = vmatprep.subr.bf16.mxu0 0
        %1357 = vmatpush1.bf16.msra.mxu0 0
        %1358 = vmatprep.subr.bf16.mxu0 0
        %1359 = vmatpush1.bf16.msra.mxu0 0
        %1360 = vmatprep.subr.bf16.mxu0 0
        %1361 = vmatpush1.bf16.msra.mxu0 0
        %1362 = vmatprep.mubr.bf16.mxu0 0
        %1363 = vmatmul.mubr.bf16.gmra.mrb[0].mxu0 %v1314
        %v1364 = vpop.f32.mrb[0].mxu0
        %v1365 = vadd.f32 %v1205, %v1364
        %v1366 = vpop.f32.mrb[0].mxu0
        %v1367 = vadd.f32 %v1205, %v1366
        %v1368 = vpop.f32.mrb[0].mxu0
        %v1369 = vadd.f32 %v1210, %v1368
        %v1370 = vpop.f32.mrb[0].mxu0
        %v1371 = vadd.f32 %v1210, %v1370
        %1372 = vmatprep.mubr.bf16.mxu0 0
        %1373 = vmatmul.mubr.bf16.gmra.mrb[0].mxu0 %v1315
        %v1374 = vpop.f32.mrb[0].mxu0
        %v1375 = vadd.f32 %v1215, %v1374
        %v1376 = vpop.f32.mrb[0].mxu0
        %v1377 = vadd.f32 %v1215, %v1376
        %v1378 = vpop.f32.mrb[0].mxu0
        %v1379 = vadd.f32 %v1220, %v1378
        %v1380 = vpop.f32.mrb[0].mxu0
        %v1381 = vadd.f32 %v1220, %v1380
        %1382 = vmatprep.mubr.bf16.mxu0 0
        %1383 = vmatmul.mubr.bf16.gmra.mrb[0].mxu0 %v1316
        %v1384 = vpop.f32.mrb[0].mxu0
        %v1385 = vadd.f32 %v1225, %v1384
        %v1386 = vpop.f32.mrb[0].mxu0
        %v1387 = vadd.f32 %v1225, %v1386
        %v1388 = vpop.f32.mrb[0].mxu0
        %v1389 = vadd.f32 %v1230, %v1388
        %v1390 = vpop.f32.mrb[0].mxu0
        %v1391 = vadd.f32 %v1230, %v1390
        %1392 = vmatprep.mubr.bf16.mxu0 0
        %1393 = vmatmul.mubr.bf16.gmra.mrb[0].mxu0 %v1317
        %v1394 = vpop.f32.mrb[0].mxu0
        %v1395 = vadd.f32 %v1235, %v1394
        %v1396 = vpop.f32.mrb[0].mxu0
        %v1397 = vadd.f32 %v1235, %v1396
        %v1398 = vpop.f32.mrb[0].mxu0
        %v1399 = vadd.f32 %v1240, %v1398
        %v1400 = vpop.f32.mrb[0].mxu0
        %v1401 = vadd.f32 %v1240, %v1400
        %1402 = vmatprep.mubr.bf16.mxu0 0
        %1403 = vmatmul.mubr.bf16.gmra.mrb[0].mxu0 %v1318
        %v1404 = vpop.f32.mrb[0].mxu0
        %v1405 = vadd.f32 %v1245, %v1404
        %v1406 = vpop.f32.mrb[0].mxu0
        %v1407 = vadd.f32 %v1245, %v1406
        %v1408 = vpop.f32.mrb[0].mxu0
        %v1409 = vadd.f32 %v1250, %v1408
        %v1410 = vpop.f32.mrb[0].mxu0
        %v1411 = vadd.f32 %v1250, %v1410
        %1412 = vmatprep.mubr.bf16.mxu0 0
        %1413 = vmatmul.mubr.bf16.gmra.mrb[0].mxu0 %v1319
        %v1414 = vpop.f32.mrb[0].mxu0
        %v1415 = vadd.f32 %v1255, %v1414
        %v1416 = vpop.f32.mrb[0].mxu0
        %v1417 = vadd.f32 %v1255, %v1416
        %v1418 = vpop.f32.mrb[0].mxu0
        %v1419 = vadd.f32 %v1260, %v1418
        %v1420 = vpop.f32.mrb[0].mxu0
        %v1421 = vadd.f32 %v1260, %v1420
        %1422 = vmatprep.mubr.bf16.mxu0 0
        %1423 = vmatmul.mubr.bf16.gmra.mrb[0].mxu0 %v1320
        %v1424 = vpop.f32.mrb[0].mxu0
        %v1425 = vadd.f32 %v1265, %v1424
        %v1426 = vpop.f32.mrb[0].mxu0
        %v1427 = vadd.f32 %v1265, %v1426
        %v1428 = vpop.f32.mrb[0].mxu0
        %v1429 = vadd.f32 %v1270, %v1428
        %v1430 = vpop.f32.mrb[0].mxu0
        %v1431 = vadd.f32 %v1270, %v1430
        %1432 = vmatprep.mubr.bf16.mxu0 0
        %1433 = vmatmul.mubr.bf16.gmra.mrb[0].mxu0 %v1321
        %v1434 = vpop.f32.mrb[0].mxu0
        %v1435 = vadd.f32 %v1275, %v1434
        %v1436 = vpop.f32.mrb[0].mxu0
        %v1437 = vadd.f32 %v1275, %v1436
        %v1438 = vpop.f32.mrb[0].mxu0
        %v1439 = vadd.f32 %v1280, %v1438
        %v1440 = vpop.f32.mrb[0].mxu0
        %v1441 = vadd.f32 %v1280, %v1440
        %1442 = vdwg.mxu0
        %1443 = vmatprep.subr.bf16.mxu0 %v1141
        %1444 = vmatpush1.bf16.msra.mxu0 %v1140
        %1445 = vmatprep.subr.bf16.mxu0 %v1145
        %1446 = vmatpush1.bf16.msra.mxu0 %v1144
        %1447 = vmatprep.subr.bf16.mxu0 %v1149
        %1448 = vmatpush1.bf16.msra.mxu0 %v1148
        %1449 = vmatprep.subr.bf16.mxu0 %v1153
        %1450 = vmatpush1.bf16.msra.mxu0 %v1152
        %1451 = vmatprep.subr.bf16.mxu0 %v1157
        %1452 = vmatpush1.bf16.msra.mxu0 %v1156
        %1453 = vmatprep.subr.bf16.mxu0 %v1161
        %1454 = vmatpush1.bf16.msra.mxu0 %v1160
        %1455 = vmatprep.subr.bf16.mxu0 %v1165
        %1456 = vmatpush1.bf16.msra.mxu0 %v1164
        %1457 = vmatprep.subr.bf16.mxu0 %v1169
        %1458 = vmatpush1.bf16.msra.mxu0 %v1168
        %1459 = vmatprep.subr.bf16.mxu0 0
        %1460 = vmatpush1.bf16.msra.mxu0 0
        %1461 = vmatprep.subr.bf16.mxu0 0
        %1462 = vmatpush1.bf16.msra.mxu0 0
        %1463 = vmatprep.subr.bf16.mxu0 0
        %1464 = vmatpush1.bf16.msra.mxu0 0
        %1465 = vmatprep.subr.bf16.mxu0 0
        %1466 = vmatpush1.bf16.msra.mxu0 0
        %1467 = vmatprep.subr.bf16.mxu0 0
        %1468 = vmatpush1.bf16.msra.mxu0 0
        %1469 = vmatprep.subr.bf16.mxu0 0
        %1470 = vmatpush1.bf16.msra.mxu0 0
        %1471 = vmatprep.subr.bf16.mxu0 0
        %1472 = vmatpush1.bf16.msra.mxu0 0
        %1473 = vmatprep.subr.bf16.mxu0 0
        %1474 = vmatpush1.bf16.msra.mxu0 0
        %1475 = vmatprep.mubr.bf16.mxu0 0
        %1476 = vmatmul.mubr.bf16.gmra.mrb[0].mxu0 %v1314
        %v1477 = vpop.f32.mrb[0].mxu0
        %v1478 = vadd.f32 %v1205, %v1477
        %v1479 = vpop.f32.mrb[0].mxu0
        %v1480 = vadd.f32 %v1205, %v1479
        %v1481 = vpop.f32.mrb[0].mxu0
        %v1482 = vadd.f32 %v1210, %v1481
        %v1483 = vpop.f32.mrb[0].mxu0
        %v1484 = vadd.f32 %v1210, %v1483
        %1485 = vmatprep.mubr.bf16.mxu0 0
        %1486 = vmatmul.mubr.bf16.gmra.mrb[0].mxu0 %v1315
        %v1487 = vpop.f32.mrb[0].mxu0
        %v1488 = vadd.f32 %v1215, %v1487
        %v1489 = vpop.f32.mrb[0].mxu0
        %v1490 = vadd.f32 %v1215, %v1489
        %v1491 = vpop.f32.mrb[0].mxu0
        %v1492 = vadd.f32 %v1220, %v1491
        %v1493 = vpop.f32.mrb[0].mxu0
        %v1494 = vadd.f32 %v1220, %v1493
        %1495 = vmatprep.mubr.bf16.mxu0 0
        %1496 = vmatmul.mubr.bf16.gmra.mrb[0].mxu0 %v1316
        %v1497 = vpop.f32.mrb[0].mxu0
        %v1498 = vadd.f32 %v1225, %v1497
        %v1499 = vpop.f32.mrb[0].mxu0
        %v1500 = vadd.f32 %v1225, %v1499
        %v1501 = vpop.f32.mrb[0].mxu0
        %v1502 = vadd.f32 %v1230, %v1501
        %v1503 = vpop.f32.mrb[0].mxu0
        %v1504 = vadd.f32 %v1230, %v1503
        %1505 = vmatprep.mubr.bf16.mxu0 0
        %1506 = vmatmul.mubr.bf16.gmra.mrb[0].mxu0 %v1317
        %v1507 = vpop.f32.mrb[0].mxu0
        %v1508 = vadd.f32 %v1235, %v1507
        %v1509 = vpop.f32.mrb[0].mxu0
        %v1510 = vadd.f32 %v1235, %v1509
        %v1511 = vpop.f32.mrb[0].mxu0
        %v1512 = vadd.f32 %v1240, %v1511
        %v1513 = vpop.f32.mrb[0].mxu0
        %v1514 = vadd.f32 %v1240, %v1513
        %1515 = vmatprep.mubr.bf16.mxu0 0
        %1516 = vmatmul.mubr.bf16.gmra.mrb[0].mxu0 %v1318
        %v1517 = vpop.f32.mrb[0].mxu0
        %v1518 = vadd.f32 %v1245, %v1517
        %v1519 = vpop.f32.mrb[0].mxu0
        %v1520 = vadd.f32 %v1245, %v1519
        %v1521 = vpop.f32.mrb[0].mxu0
        %v1522 = vadd.f32 %v1250, %v1521
        %v1523 = vpop.f32.mrb[0].mxu0
        %v1524 = vadd.f32 %v1250, %v1523
        %1525 = vmatprep.mubr.bf16.mxu0 0
        %1526 = vmatmul.mubr.bf16.gmra.mrb[0].mxu0 %v1319
        %v1527 = vpop.f32.mrb[0].mxu0
        %v1528 = vadd.f32 %v1255, %v1527
        %v1529 = vpop.f32.mrb[0].mxu0
        %v1530 = vadd.f32 %v1255, %v1529
        %v1531 = vpop.f32.mrb[0].mxu0
        %v1532 = vadd.f32 %v1260, %v1531
        %v1533 = vpop.f32.mrb[0].mxu0
        %v1534 = vadd.f32 %v1260, %v1533
        %1535 = vmatprep.mubr.bf16.mxu0 0
        %1536 = vmatmul.mubr.bf16.gmra.mrb[0].mxu0 %v1320
        %v1537 = vpop.f32.mrb[0].mxu0
        %v1538 = vadd.f32 %v1265, %v1537
        %v1539 = vpop.f32.mrb[0].mxu0
        %v1540 = vadd.f32 %v1265, %v1539
        %v1541 = vpop.f32.mrb[0].mxu0
        %v1542 = vadd.f32 %v1270, %v1541
        %v1543 = vpop.f32.mrb[0].mxu0
        %v1544 = vadd.f32 %v1270, %v1543
        %1545 = vmatprep.mubr.bf16.mxu0 0
        %1546 = vmatmul.mubr.bf16.gmra.mrb[0].mxu0 %v1321
        %v1547 = vpop.f32.mrb[0].mxu0
        %v1548 = vadd.f32 %v1275, %v1547
        %v1549 = vpop.f32.mrb[0].mxu0
        %v1550 = vadd.f32 %v1275, %v1549
        %v1551 = vpop.f32.mrb[0].mxu0
        %v1552 = vadd.f32 %v1280, %v1551
        %v1553 = vpop.f32.mrb[0].mxu0
        %v1554 = vadd.f32 %v1280, %v1553
        %1555 = vdwg.mxu0
        %v1556 = vmul.f32 %v1365, 0.01
        %v1557 = vmul.f32 %v1367, 0.01
        %v1558 = vmul.f32 %v1478, 0.01
        %v1559 = vmul.f32 %v1480, 0.01
        %v1560 = vmul.f32 %v1369, 0.01
        %v1561 = vmul.f32 %v1371, 0.01
        %v1562 = vmul.f32 %v1482, 0.01
        %v1563 = vmul.f32 %v1484, 0.01
        %v1564 = vmul.f32 %v1375, 0.01
        %v1565 = vmul.f32 %v1377, 0.01
        %v1566 = vmul.f32 %v1488, 0.01
        %v1567 = vmul.f32 %v1490, 0.01
        %v1568 = vmul.f32 %v1379, 0.01
        %v1569 = vmul.f32 %v1381, 0.01
        %v1570 = vmul.f32 %v1492, 0.01
        %v1571 = vmul.f32 %v1494, 0.01
        %v1572 = vmul.f32 %v1385, 0.01
        %v1573 = vmul.f32 %v1387, 0.01
        %v1574 = vmul.f32 %v1498, 0.01
        %v1575 = vmul.f32 %v1500, 0.01
        %v1576 = vmul.f32 %v1389, 0.01
        %v1577 = vmul.f32 %v1391, 0.01
        %v1578 = vmul.f32 %v1502, 0.01
        %v1579 = vmul.f32 %v1504, 0.01
        %v1580 = vmul.f32 %v1395, 0.01
        %v1581 = vmul.f32 %v1397, 0.01
        %v1582 = vmul.f32 %v1508, 0.01
        %v1583 = vmul.f32 %v1510, 0.01
        %v1584 = vmul.f32 %v1399, 0.01
        %v1585 = vmul.f32 %v1401, 0.01
        %v1586 = vmul.f32 %v1512, 0.01
        %v1587 = vmul.f32 %v1514, 0.01
        %v1588 = vmul.f32 %v1405, 0.01
        %v1589 = vmul.f32 %v1407, 0.01
        %v1590 = vmul.f32 %v1518, 0.01
        %v1591 = vmul.f32 %v1520, 0.01
        %v1592 = vmul.f32 %v1409, 0.01
        %v1593 = vmul.f32 %v1411, 0.01
        %v1594 = vmul.f32 %v1522, 0.01
        %v1595 = vmul.f32 %v1524, 0.01
        %v1596 = vmul.f32 %v1415, 0.01
        %v1597 = vmul.f32 %v1417, 0.01
        %v1598 = vmul.f32 %v1528, 0.01
        %v1599 = vmul.f32 %v1530, 0.01
        %v1600 = vmul.f32 %v1419, 0.01
        %v1601 = vmul.f32 %v1421, 0.01
        %v1602 = vmul.f32 %v1532, 0.01
        %v1603 = vmul.f32 %v1534, 0.01
        %v1604 = vmul.f32 %v1425, 0.01
        %v1605 = vmul.f32 %v1427, 0.01
        %v1606 = vmul.f32 %v1538, 0.01
        %v1607 = vmul.f32 %v1540, 0.01
        %v1608 = vmul.f32 %v1429, 0.01
        %v1609 = vmul.f32 %v1431, 0.01
        %v1610 = vmul.f32 %v1542, 0.01
        %v1611 = vmul.f32 %v1544, 0.01
        %v1612 = vmul.f32 %v1435, 0.01
        %v1613 = vmul.f32 %v1437, 0.01
        %v1614 = vmul.f32 %v1548, 0.01
        %v1615 = vmul.f32 %v1550, 0.01
        %v1616 = vmul.f32 %v1439, 0.01
        %v1617 = vmul.f32 %v1441, 0.01
        %v1618 = vmul.f32 %v1552, 0.01
        %v1619 = vmul.f32 %v1554, 0.01
        %v1620 = vmax.f32 %v1365, %v1556
        %v1621 = vmax.f32 %v1367, %v1557
        %v1622 = vmax.f32 %v1478, %v1558
        %v1623 = vmax.f32 %v1480, %v1559
        %v1624 = vmax.f32 %v1369, %v1560
        %v1625 = vmax.f32 %v1371, %v1561
        %v1626 = vmax.f32 %v1482, %v1562
        %v1627 = vmax.f32 %v1484, %v1563
        %v1628 = vmax.f32 %v1375, %v1564
        %v1629 = vmax.f32 %v1377, %v1565
        %v1630 = vmax.f32 %v1488, %v1566
        %v1631 = vmax.f32 %v1490, %v1567
        %v1632 = vmax.f32 %v1379, %v1568
        %v1633 = vmax.f32 %v1381, %v1569
        %v1634 = vmax.f32 %v1492, %v1570
        %v1635 = vmax.f32 %v1494, %v1571
        %v1636 = vmax.f32 %v1385, %v1572
        %v1637 = vmax.f32 %v1387, %v1573
        %v1638 = vmax.f32 %v1498, %v1574
        %v1639 = vmax.f32 %v1500, %v1575
        %v1640 = vmax.f32 %v1389, %v1576
        %v1641 = vmax.f32 %v1391, %v1577
        %v1642 = vmax.f32 %v1502, %v1578
        %v1643 = vmax.f32 %v1504, %v1579
        %v1644 = vmax.f32 %v1395, %v1580
        %v1645 = vmax.f32 %v1397, %v1581
        %v1646 = vmax.f32 %v1508, %v1582
        %v1647 = vmax.f32 %v1510, %v1583
        %v1648 = vmax.f32 %v1399, %v1584
        %v1649 = vmax.f32 %v1401, %v1585
        %v1650 = vmax.f32 %v1512, %v1586
        %v1651 = vmax.f32 %v1514, %v1587
        %v1652 = vmax.f32 %v1405, %v1588
        %v1653 = vmax.f32 %v1407, %v1589
        %v1654 = vmax.f32 %v1518, %v1590
        %v1655 = vmax.f32 %v1520, %v1591
        %v1656 = vmax.f32 %v1409, %v1592
        %v1657 = vmax.f32 %v1411, %v1593
        %v1658 = vmax.f32 %v1522, %v1594
        %v1659 = vmax.f32 %v1524, %v1595
        %v1660 = vmax.f32 %v1415, %v1596
        %v1661 = vmax.f32 %v1417, %v1597
        %v1662 = vmax.f32 %v1528, %v1598
        %v1663 = vmax.f32 %v1530, %v1599
        %v1664 = vmax.f32 %v1419, %v1600
        %v1665 = vmax.f32 %v1421, %v1601
        %v1666 = vmax.f32 %v1532, %v1602
        %v1667 = vmax.f32 %v1534, %v1603
        %v1668 = vmax.f32 %v1425, %v1604
        %v1669 = vmax.f32 %v1427, %v1605
        %v1670 = vmax.f32 %v1538, %v1606
        %v1671 = vmax.f32 %v1540, %v1607
        %v1672 = vmax.f32 %v1429, %v1608
        %v1673 = vmax.f32 %v1431, %v1609
        %v1674 = vmax.f32 %v1542, %v1610
        %v1675 = vmax.f32 %v1544, %v1611
        %v1676 = vmax.f32 %v1435, %v1612
        %v1677 = vmax.f32 %v1437, %v1613
        %v1678 = vmax.f32 %v1548, %v1614
        %v1679 = vmax.f32 %v1550, %v1615
        %v1680 = vmax.f32 %v1439, %v1616
        %v1681 = vmax.f32 %v1441, %v1617
        %v1682 = vmax.f32 %v1552, %v1618
        %v1683 = vmax.f32 %v1554, %v1619
        %v1684 = vpack.c.bf16 %v1624, %v1620
        %v1685 = vpack.c.bf16 %v1625, %v1621
        %v1686 = vpack.c.bf16 %v1626, %v1622
        %v1687 = vpack.c.bf16 %v1627, %v1623
        %v1688 = vpack.c.bf16 %v1632, %v1628
        %v1689 = vpack.c.bf16 %v1633, %v1629
        %v1690 = vpack.c.bf16 %v1634, %v1630
        %v1691 = vpack.c.bf16 %v1635, %v1631
        %v1692 = vpack.c.bf16 %v1640, %v1636
        %v1693 = vpack.c.bf16 %v1641, %v1637
        %v1694 = vpack.c.bf16 %v1642, %v1638
        %v1695 = vpack.c.bf16 %v1643, %v1639
        %v1696 = vpack.c.bf16 %v1648, %v1644
        %v1697 = vpack.c.bf16 %v1649, %v1645
        %v1698 = vpack.c.bf16 %v1650, %v1646
        %v1699 = vpack.c.bf16 %v1651, %v1647
        %v1700 = vpack.c.bf16 %v1656, %v1652
        %v1701 = vpack.c.bf16 %v1657, %v1653
        %v1702 = vpack.c.bf16 %v1658, %v1654
        %v1703 = vpack.c.bf16 %v1659, %v1655
        %v1704 = vpack.c.bf16 %v1664, %v1660
        %v1705 = vpack.c.bf16 %v1665, %v1661
        %v1706 = vpack.c.bf16 %v1666, %v1662
        %v1707 = vpack.c.bf16 %v1667, %v1663
        %v1708 = vpack.c.bf16 %v1672, %v1668
        %v1709 = vpack.c.bf16 %v1673, %v1669
        %v1710 = vpack.c.bf16 %v1674, %v1670
        %v1711 = vpack.c.bf16 %v1675, %v1671
        %v1712 = vpack.c.bf16 %v1680, %v1676
        %v1713 = vpack.c.bf16 %v1681, %v1677
        %v1714 = vpack.c.bf16 %v1682, %v1678
        %v1715 = vpack.c.bf16 %v1683, %v1679
        %v1716 = vld [vmem:[%s5] sm:$0xf]
        %v1717 = vld [vmem:[%s5 + $0x4] sm:$0xf]
        %v1718 = vld [vmem:[%s5 + $0x8] sm:$0xf]
        %v1719 = vld [vmem:[%s5 + $0xc] sm:$0xf]
        %v1720 = vld [vmem:[%s5 + $0x10] sm:$0xf]
        %v1721 = vld [vmem:[%s5 + $0x14] sm:$0xf]
        %v1722 = vld [vmem:[%s5 + $0x18] sm:$0xf]
        %v1723 = vld [vmem:[%s5 + $0x1c] sm:$0xf]
        %v1724 = vld [vmem:[%s5 + $0x20] sm:$0xf]
        %v1725 = vld [vmem:[%s5 + $0x24] sm:$0xf]
        %v1726 = vld [vmem:[%s5 + $0x28] sm:$0xf]
        %v1727 = vld [vmem:[%s5 + $0x2c] sm:$0xf]
        %v1728 = vld [vmem:[%s5 + $0x30] sm:$0xf]
        %v1729 = vld [vmem:[%s5 + $0x34] sm:$0xf]
        %v1730 = vld [vmem:[%s5 + $0x38] sm:$0xf]
        %v1731 = vld [vmem:[%s5 + $0x3c] sm:$0xf]
        %v1732 = vld [vmem:[%s6] sm:$0xff]
        %v1733 = vld [vmem:[%s6 + $0x8] sm:$0xff]
        %v1734 = vld [vmem:[%s6 + $0x10] sm:$0xff]
        %v1735 = vld [vmem:[%s6 + $0x18] sm:$0xff]
        %v1736 = vld [vmem:[%s6 + $0x20] sm:$0xff]
        %v1737 = vld [vmem:[%s6 + $0x28] sm:$0xff]
        %v1738 = vld [vmem:[%s6 + $0x30] sm:$0xff]
        %v1739 = vld [vmem:[%s6 + $0x38] sm:$0xff]
        %v1740 = vld [vmem:[%s6 + $0x40] sm:$0xff]
        %v1741 = vld [vmem:[%s6 + $0x48] sm:$0xff]
        %v1742 = vld [vmem:[%s6 + $0x50] sm:$0xff]
        %v1743 = vld [vmem:[%s6 + $0x58] sm:$0xff]
        %v1744 = vld [vmem:[%s6 + $0x60] sm:$0xff]
        %v1745 = vld [vmem:[%s6 + $0x68] sm:$0xff]
        %v1746 = vld [vmem:[%s6 + $0x70] sm:$0xff]
        %v1747 = vld [vmem:[%s6 + $0x78] sm:$0xff]
        %1749 = vset.pattern.permute.xlu0 0
        %1750 = vperm.xlu0 %1749, %v1732
        %v1751 = vpop.permute.xlu0 %1750
        %1754 = vset.pattern.permute.xlu0 0
        %1755 = vperm.xlu0 %1754, %v1733
        %v1756 = vpop.permute.xlu0 %1755
        %1759 = vset.pattern.permute.xlu0 0
        %1760 = vperm.xlu0 %1759, %v1734
        %v1761 = vpop.permute.xlu0 %1760
        %1764 = vset.pattern.permute.xlu0 0
        %1765 = vperm.xlu0 %1764, %v1735
        %v1766 = vpop.permute.xlu0 %1765
        %1769 = vset.pattern.permute.xlu0 0
        %1770 = vperm.xlu0 %1769, %v1736
        %v1771 = vpop.permute.xlu0 %1770
        %1774 = vset.pattern.permute.xlu0 0
        %1775 = vperm.xlu0 %1774, %v1737
        %v1776 = vpop.permute.xlu0 %1775
        %1779 = vset.pattern.permute.xlu0 0
        %1780 = vperm.xlu0 %1779, %v1738
        %v1781 = vpop.permute.xlu0 %1780
        %1784 = vset.pattern.permute.xlu0 0
        %1785 = vperm.xlu0 %1784, %v1739
        %v1786 = vpop.permute.xlu0 %1785
        %1789 = vset.pattern.permute.xlu0 0
        %1790 = vperm.xlu0 %1789, %v1740
        %v1791 = vpop.permute.xlu0 %1790
        %1794 = vset.pattern.permute.xlu0 0
        %1795 = vperm.xlu0 %1794, %v1741
        %v1796 = vpop.permute.xlu0 %1795
        %1799 = vset.pattern.permute.xlu0 0
        %1800 = vperm.xlu0 %1799, %v1742
        %v1801 = vpop.permute.xlu0 %1800
        %1804 = vset.pattern.permute.xlu0 0
        %1805 = vperm.xlu0 %1804, %v1743
        %v1806 = vpop.permute.xlu0 %1805
        %1809 = vset.pattern.permute.xlu0 0
        %1810 = vperm.xlu0 %1809, %v1744
        %v1811 = vpop.permute.xlu0 %1810
        %1814 = vset.pattern.permute.xlu0 0
        %1815 = vperm.xlu0 %1814, %v1745
        %v1816 = vpop.permute.xlu0 %1815
        %1819 = vset.pattern.permute.xlu0 0
        %1820 = vperm.xlu0 %1819, %v1746
        %v1821 = vpop.permute.xlu0 %1820
        %1824 = vset.pattern.permute.xlu0 0
        %1825 = vperm.xlu0 %1824, %v1747
        %v1826 = vpop.permute.xlu0 %1825
        %v1844 = vunpack.c.l.b16 %v1716
        %v1845 = vunpack.c.l.b16 %v1717
        %v1846 = vunpack.c.l.b16 %v1718
        %v1847 = vunpack.c.l.b16 %v1719
        %v1848 = vunpack.c.l.b16 %v1720
        %v1849 = vunpack.c.l.b16 %v1721
        %v1850 = vunpack.c.l.b16 %v1722
        %v1851 = vunpack.c.l.b16 %v1723
        %v1852 = vunpack.c.l.b16 %v1724
        %v1853 = vunpack.c.l.b16 %v1725
        %v1854 = vunpack.c.l.b16 %v1726
        %v1855 = vunpack.c.l.b16 %v1727
        %v1856 = vunpack.c.l.b16 %v1728
        %v1857 = vunpack.c.l.b16 %v1729
        %v1858 = vunpack.c.l.b16 %v1730
        %v1859 = vunpack.c.l.b16 %v1731
        %v1860 = vpack.c.b16 %v1845, %v1844
        %v1861 = vpack.c.b16 %v1847, %v1846
        %v1862 = vpack.c.b16 %v1849, %v1848
        %v1863 = vpack.c.b16 %v1851, %v1850
        %v1864 = vpack.c.b16 %v1853, %v1852
        %v1865 = vpack.c.b16 %v1855, %v1854
        %v1866 = vpack.c.b16 %v1857, %v1856
        %v1867 = vpack.c.b16 %v1859, %v1858
        %1876 = vmatprep.subr.bf16.mxu0 %v1685
        %1877 = vmatpush1.bf16.msra.mxu0 %v1684
        %1878 = vmatprep.subr.bf16.mxu0 %v1689
        %1879 = vmatpush1.bf16.msra.mxu0 %v1688
        %1880 = vmatprep.subr.bf16.mxu0 %v1693
        %1881 = vmatpush1.bf16.msra.mxu0 %v1692
        %1882 = vmatprep.subr.bf16.mxu0 %v1697
        %1883 = vmatpush1.bf16.msra.mxu0 %v1696
        %1884 = vmatprep.subr.bf16.mxu0 %v1701
        %1885 = vmatpush1.bf16.msra.mxu0 %v1700
        %1886 = vmatprep.subr.bf16.mxu0 %v1705
        %1887 = vmatpush1.bf16.msra.mxu0 %v1704
        %1888 = vmatprep.subr.bf16.mxu0 %v1709
        %1889 = vmatpush1.bf16.msra.mxu0 %v1708
        %1890 = vmatprep.subr.bf16.mxu0 %v1713
        %1891 = vmatpush1.bf16.msra.mxu0 %v1712
        %1892 = vmatprep.subr.bf16.mxu0 0
        %1893 = vmatpush1.bf16.msra.mxu0 0
        %1894 = vmatprep.subr.bf16.mxu0 0
        %1895 = vmatpush1.bf16.msra.mxu0 0
        %1896 = vmatprep.subr.bf16.mxu0 0
        %1897 = vmatpush1.bf16.msra.mxu0 0
        %1898 = vmatprep.subr.bf16.mxu0 0
        %1899 = vmatpush1.bf16.msra.mxu0 0
        %1900 = vmatprep.subr.bf16.mxu0 0
        %1901 = vmatpush1.bf16.msra.mxu0 0
        %1902 = vmatprep.subr.bf16.mxu0 0
        %1903 = vmatpush1.bf16.msra.mxu0 0
        %1904 = vmatprep.subr.bf16.mxu0 0
        %1905 = vmatpush1.bf16.msra.mxu0 0
        %1906 = vmatprep.subr.bf16.mxu0 0
        %1907 = vmatpush1.bf16.msra.mxu0 0
        %1908 = vmatprep.mubr.bf16.mxu0 0
        %1909 = vmatmul.mubr.bf16.gmra.mrb[0].mxu0 %v1860
        %v1910 = vpop.f32.mrb[0].mxu0
        %v1911 = vadd.f32 %v1751, %v1910
        %v1912 = vpop.f32.mrb[0].mxu0
        %v1913 = vadd.f32 %v1751, %v1912
        %v1914 = vpop.f32.mrb[0].mxu0
        %v1915 = vadd.f32 %v1756, %v1914
        %v1916 = vpop.f32.mrb[0].mxu0
        %v1917 = vadd.f32 %v1756, %v1916
        %1918 = vmatprep.mubr.bf16.mxu0 0
        %1919 = vmatmul.mubr.bf16.gmra.mrb[0].mxu0 %v1861
        %v1920 = vpop.f32.mrb[0].mxu0
        %v1921 = vadd.f32 %v1761, %v1920
        %v1922 = vpop.f32.mrb[0].mxu0
        %v1923 = vadd.f32 %v1761, %v1922
        %v1924 = vpop.f32.mrb[0].mxu0
        %v1925 = vadd.f32 %v1766, %v1924
        %v1926 = vpop.f32.mrb[0].mxu0
        %v1927 = vadd.f32 %v1766, %v1926
        %1928 = vmatprep.mubr.bf16.mxu0 0
        %1929 = vmatmul.mubr.bf16.gmra.mrb[0].mxu0 %v1862
        %v1930 = vpop.f32.mrb[0].mxu0
        %v1931 = vadd.f32 %v1771, %v1930
        %v1932 = vpop.f32.mrb[0].mxu0
        %v1933 = vadd.f32 %v1771, %v1932
        %v1934 = vpop.f32.mrb[0].mxu0
        %v1935 = vadd.f32 %v1776, %v1934
        %v1936 = vpop.f32.mrb[0].mxu0
        %v1937 = vadd.f32 %v1776, %v1936
        %1938 = vmatprep.mubr.bf16.mxu0 0
        %1939 = vmatmul.mubr.bf16.gmra.mrb[0].mxu0 %v1863
        %v1940 = vpop.f32.mrb[0].mxu0
        %v1941 = vadd.f32 %v1781, %v1940
        %v1942 = vpop.f32.mrb[0].mxu0
        %v1943 = vadd.f32 %v1781, %v1942
        %v1944 = vpop.f32.mrb[0].mxu0
        %v1945 = vadd.f32 %v1786, %v1944
        %v1946 = vpop.f32.mrb[0].mxu0
        %v1947 = vadd.f32 %v1786, %v1946
        %1948 = vmatprep.mubr.bf16.mxu0 0
        %1949 = vmatmul.mubr.bf16.gmra.mrb[0].mxu0 %v1864
        %v1950 = vpop.f32.mrb[0].mxu0
        %v1951 = vadd.f32 %v1791, %v1950
        %v1952 = vpop.f32.mrb[0].mxu0
        %v1953 = vadd.f32 %v1791, %v1952
        %v1954 = vpop.f32.mrb[0].mxu0
        %v1955 = vadd.f32 %v1796, %v1954
        %v1956 = vpop.f32.mrb[0].mxu0
        %v1957 = vadd.f32 %v1796, %v1956
        %1958 = vmatprep.mubr.bf16.mxu0 0
        %1959 = vmatmul.mubr.bf16.gmra.mrb[0].mxu0 %v1865
        %v1960 = vpop.f32.mrb[0].mxu0
        %v1961 = vadd.f32 %v1801, %v1960
        %v1962 = vpop.f32.mrb[0].mxu0
        %v1963 = vadd.f32 %v1801, %v1962
        %v1964 = vpop.f32.mrb[0].mxu0
        %v1965 = vadd.f32 %v1806, %v1964
        %v1966 = vpop.f32.mrb[0].mxu0
        %v1967 = vadd.f32 %v1806, %v1966
        %1968 = vmatprep.mubr.bf16.mxu0 0
        %1969 = vmatmul.mubr.bf16.gmra.mrb[0].mxu0 %v1866
        %v1970 = vpop.f32.mrb[0].mxu0
        %v1971 = vadd.f32 %v1811, %v1970
        %v1972 = vpop.f32.mrb[0].mxu0
        %v1973 = vadd.f32 %v1811, %v1972
        %v1974 = vpop.f32.mrb[0].mxu0
        %v1975 = vadd.f32 %v1816, %v1974
        %v1976 = vpop.f32.mrb[0].mxu0
        %v1977 = vadd.f32 %v1816, %v1976
        %1978 = vmatprep.mubr.bf16.mxu0 0
        %1979 = vmatmul.mubr.bf16.gmra.mrb[0].mxu0 %v1867
        %v1980 = vpop.f32.mrb[0].mxu0
        %v1981 = vadd.f32 %v1821, %v1980
        %v1982 = vpop.f32.mrb[0].mxu0
        %v1983 = vadd.f32 %v1821, %v1982
        %v1984 = vpop.f32.mrb[0].mxu0
        %v1985 = vadd.f32 %v1826, %v1984
        %v1986 = vpop.f32.mrb[0].mxu0
        %v1987 = vadd.f32 %v1826, %v1986
        %1988 = vdwg.mxu0
        %1989 = vmatprep.subr.bf16.mxu0 %v1687
        %1990 = vmatpush1.bf16.msra.mxu0 %v1686
        %1991 = vmatprep.subr.bf16.mxu0 %v1691
        %1992 = vmatpush1.bf16.msra.mxu0 %v1690
        %1993 = vmatprep.subr.bf16.mxu0 %v1695
        %1994 = vmatpush1.bf16.msra.mxu0 %v1694
        %1995 = vmatprep.subr.bf16.mxu0 %v1699
        %1996 = vmatpush1.bf16.msra.mxu0 %v1698
        %1997 = vmatprep.subr.bf16.mxu0 %v1703
        %1998 = vmatpush1.bf16.msra.mxu0 %v1702
        %1999 = vmatprep.subr.bf16.mxu0 %v1707
        %2000 = vmatpush1.bf16.msra.mxu0 %v1706
        %2001 = vmatprep.subr.bf16.mxu0 %v1711
        %2002 = vmatpush1.bf16.msra.mxu0 %v1710
        %2003 = vmatprep.subr.bf16.mxu0 %v1715
        %2004 = vmatpush1.bf16.msra.mxu0 %v1714
        %2005 = vmatprep.subr.bf16.mxu0 0
        %2006 = vmatpush1.bf16.msra.mxu0 0
        %2007 = vmatprep.subr.bf16.mxu0 0
        %2008 = vmatpush1.bf16.msra.mxu0 0
        %2009 = vmatprep.subr.bf16.mxu0 0
        %2010 = vmatpush1.bf16.msra.mxu0 0
        %2011 = vmatprep.subr.bf16.mxu0 0
        %2012 = vmatpush1.bf16.msra.mxu0 0
        %2013 = vmatprep.subr.bf16.mxu0 0
        %2014 = vmatpush1.bf16.msra.mxu0 0
        %2015 = vmatprep.subr.bf16.mxu0 0
        %2016 = vmatpush1.bf16.msra.mxu0 0
        %2017 = vmatprep.subr.bf16.mxu0 0
        %2018 = vmatpush1.bf16.msra.mxu0 0
        %2019 = vmatprep.subr.bf16.mxu0 0
        %2020 = vmatpush1.bf16.msra.mxu0 0
        %2021 = vmatprep.mubr.bf16.mxu0 0
        %2022 = vmatmul.mubr.bf16.gmra.mrb[0].mxu0 %v1860
        %v2023 = vpop.f32.mrb[0].mxu0
        %v2024 = vadd.f32 %v1751, %v2023
        %v2025 = vpop.f32.mrb[0].mxu0
        %v2026 = vadd.f32 %v1751, %v2025
        %v2027 = vpop.f32.mrb[0].mxu0
        %v2028 = vadd.f32 %v1756, %v2027
        %v2029 = vpop.f32.mrb[0].mxu0
        %v2030 = vadd.f32 %v1756, %v2029
        %2031 = vmatprep.mubr.bf16.mxu0 0
        %2032 = vmatmul.mubr.bf16.gmra.mrb[0].mxu0 %v1861
        %v2033 = vpop.f32.mrb[0].mxu0
        %v2034 = vadd.f32 %v1761, %v2033
        %v2035 = vpop.f32.mrb[0].mxu0
        %v2036 = vadd.f32 %v1761, %v2035
        %v2037 = vpop.f32.mrb[0].mxu0
        %v2038 = vadd.f32 %v1766, %v2037
        %v2039 = vpop.f32.mrb[0].mxu0
        %v2040 = vadd.f32 %v1766, %v2039
        %2041 = vmatprep.mubr.bf16.mxu0 0
        %2042 = vmatmul.mubr.bf16.gmra.mrb[0].mxu0 %v1862
        %v2043 = vpop.f32.mrb[0].mxu0
        %v2044 = vadd.f32 %v1771, %v2043
        %v2045 = vpop.f32.mrb[0].mxu0
        %v2046 = vadd.f32 %v1771, %v2045
        %v2047 = vpop.f32.mrb[0].mxu0
        %v2048 = vadd.f32 %v1776, %v2047
        %v2049 = vpop.f32.mrb[0].mxu0
        %v2050 = vadd.f32 %v1776, %v2049
        %2051 = vmatprep.mubr.bf16.mxu0 0
        %2052 = vmatmul.mubr.bf16.gmra.mrb[0].mxu0 %v1863
        %v2053 = vpop.f32.mrb[0].mxu0
        %v2054 = vadd.f32 %v1781, %v2053
        %v2055 = vpop.f32.mrb[0].mxu0
        %v2056 = vadd.f32 %v1781, %v2055
        %v2057 = vpop.f32.mrb[0].mxu0
        %v2058 = vadd.f32 %v1786, %v2057
        %v2059 = vpop.f32.mrb[0].mxu0
        %v2060 = vadd.f32 %v1786, %v2059
        %2061 = vmatprep.mubr.bf16.mxu0 0
        %2062 = vmatmul.mubr.bf16.gmra.mrb[0].mxu0 %v1864
        %v2063 = vpop.f32.mrb[0].mxu0
        %v2064 = vadd.f32 %v1791, %v2063
        %v2065 = vpop.f32.mrb[0].mxu0
        %v2066 = vadd.f32 %v1791, %v2065
        %v2067 = vpop.f32.mrb[0].mxu0
        %v2068 = vadd.f32 %v1796, %v2067
        %v2069 = vpop.f32.mrb[0].mxu0
        %v2070 = vadd.f32 %v1796, %v2069
        %2071 = vmatprep.mubr.bf16.mxu0 0
        %2072 = vmatmul.mubr.bf16.gmra.mrb[0].mxu0 %v1865
        %v2073 = vpop.f32.mrb[0].mxu0
        %v2074 = vadd.f32 %v1801, %v2073
        %v2075 = vpop.f32.mrb[0].mxu0
        %v2076 = vadd.f32 %v1801, %v2075
        %v2077 = vpop.f32.mrb[0].mxu0
        %v2078 = vadd.f32 %v1806, %v2077
        %v2079 = vpop.f32.mrb[0].mxu0
        %v2080 = vadd.f32 %v1806, %v2079
        %2081 = vmatprep.mubr.bf16.mxu0 0
        %2082 = vmatmul.mubr.bf16.gmra.mrb[0].mxu0 %v1866
        %v2083 = vpop.f32.mrb[0].mxu0
        %v2084 = vadd.f32 %v1811, %v2083
        %v2085 = vpop.f32.mrb[0].mxu0
        %v2086 = vadd.f32 %v1811, %v2085
        %v2087 = vpop.f32.mrb[0].mxu0
        %v2088 = vadd.f32 %v1816, %v2087
        %v2089 = vpop.f32.mrb[0].mxu0
        %v2090 = vadd.f32 %v1816, %v2089
        %2091 = vmatprep.mubr.bf16.mxu0 0
        %2092 = vmatmul.mubr.bf16.gmra.mrb[0].mxu0 %v1867
        %v2093 = vpop.f32.mrb[0].mxu0
        %v2094 = vadd.f32 %v1821, %v2093
        %v2095 = vpop.f32.mrb[0].mxu0
        %v2096 = vadd.f32 %v1821, %v2095
        %v2097 = vpop.f32.mrb[0].mxu0
        %v2098 = vadd.f32 %v1826, %v2097
        %v2099 = vpop.f32.mrb[0].mxu0
        %v2100 = vadd.f32 %v1826, %v2099
        %2101 = vdwg.mxu0
        %v2102 = vmul.f32 %v1911, 0.01
        %v2103 = vmul.f32 %v1913, 0.01
        %v2104 = vmul.f32 %v2024, 0.01
        %v2105 = vmul.f32 %v2026, 0.01
        %v2106 = vmul.f32 %v1915, 0.01
        %v2107 = vmul.f32 %v1917, 0.01
        %v2108 = vmul.f32 %v2028, 0.01
        %v2109 = vmul.f32 %v2030, 0.01
        %v2110 = vmul.f32 %v1921, 0.01
        %v2111 = vmul.f32 %v1923, 0.01
        %v2112 = vmul.f32 %v2034, 0.01
        %v2113 = vmul.f32 %v2036, 0.01
        %v2114 = vmul.f32 %v1925, 0.01
        %v2115 = vmul.f32 %v1927, 0.01
        %v2116 = vmul.f32 %v2038, 0.01
        %v2117 = vmul.f32 %v2040, 0.01
        %v2118 = vmul.f32 %v1931, 0.01
        %v2119 = vmul.f32 %v1933, 0.01
        %v2120 = vmul.f32 %v2044, 0.01
        %v2121 = vmul.f32 %v2046, 0.01
        %v2122 = vmul.f32 %v1935, 0.01
        %v2123 = vmul.f32 %v1937, 0.01
        %v2124 = vmul.f32 %v2048, 0.01
        %v2125 = vmul.f32 %v2050, 0.01
        %v2126 = vmul.f32 %v1941, 0.01
        %v2127 = vmul.f32 %v1943, 0.01
        %v2128 = vmul.f32 %v2054, 0.01
        %v2129 = vmul.f32 %v2056, 0.01
        %v2130 = vmul.f32 %v1945, 0.01
        %v2131 = vmul.f32 %v1947, 0.01
        %v2132 = vmul.f32 %v2058, 0.01
        %v2133 = vmul.f32 %v2060, 0.01
        %v2134 = vmul.f32 %v1951, 0.01
        %v2135 = vmul.f32 %v1953, 0.01
        %v2136 = vmul.f32 %v2064, 0.01
        %v2137 = vmul.f32 %v2066, 0.01
        %v2138 = vmul.f32 %v1955, 0.01
        %v2139 = vmul.f32 %v1957, 0.01
        %v2140 = vmul.f32 %v2068, 0.01
        %v2141 = vmul.f32 %v2070, 0.01
        %v2142 = vmul.f32 %v1961, 0.01
        %v2143 = vmul.f32 %v1963, 0.01
        %v2144 = vmul.f32 %v2074, 0.01
        %v2145 = vmul.f32 %v2076, 0.01
        %v2146 = vmul.f32 %v1965, 0.01
        %v2147 = vmul.f32 %v1967, 0.01
        %v2148 = vmul.f32 %v2078, 0.01
        %v2149 = vmul.f32 %v2080, 0.01
        %v2150 = vmul.f32 %v1971, 0.01
        %v2151 = vmul.f32 %v1973, 0.01
        %v2152 = vmul.f32 %v2084, 0.01
        %v2153 = vmul.f32 %v2086, 0.01
        %v2154 = vmul.f32 %v1975, 0.01
        %v2155 = vmul.f32 %v1977, 0.01
        %v2156 = vmul.f32 %v2088, 0.01
        %v2157 = vmul.f32 %v2090, 0.01
        %v2158 = vmul.f32 %v1981, 0.01
        %v2159 = vmul.f32 %v1983, 0.01
        %v2160 = vmul.f32 %v2094, 0.01
        %v2161 = vmul.f32 %v2096, 0.01
        %v2162 = vmul.f32 %v1985, 0.01
        %v2163 = vmul.f32 %v1987, 0.01
        %v2164 = vmul.f32 %v2098, 0.01
        %v2165 = vmul.f32 %v2100, 0.01
        %v2166 = vmax.f32 %v1911, %v2102
        %v2167 = vmax.f32 %v1913, %v2103
        %v2168 = vmax.f32 %v2024, %v2104
        %v2169 = vmax.f32 %v2026, %v2105
        %v2170 = vmax.f32 %v1915, %v2106
        %v2171 = vmax.f32 %v1917, %v2107
        %v2172 = vmax.f32 %v2028, %v2108
        %v2173 = vmax.f32 %v2030, %v2109
        %v2174 = vmax.f32 %v1921, %v2110
        %v2175 = vmax.f32 %v1923, %v2111
        %v2176 = vmax.f32 %v2034, %v2112
        %v2177 = vmax.f32 %v2036, %v2113
        %v2178 = vmax.f32 %v1925, %v2114
        %v2179 = vmax.f32 %v1927, %v2115
        %v2180 = vmax.f32 %v2038, %v2116
        %v2181 = vmax.f32 %v2040, %v2117
        %v2182 = vmax.f32 %v1931, %v2118
        %v2183 = vmax.f32 %v1933, %v2119
        %v2184 = vmax.f32 %v2044, %v2120
        %v2185 = vmax.f32 %v2046, %v2121
        %v2186 = vmax.f32 %v1935, %v2122
        %v2187 = vmax.f32 %v1937, %v2123
        %v2188 = vmax.f32 %v2048, %v2124
        %v2189 = vmax.f32 %v2050, %v2125
        %v2190 = vmax.f32 %v1941, %v2126
        %v2191 = vmax.f32 %v1943, %v2127
        %v2192 = vmax.f32 %v2054, %v2128
        %v2193 = vmax.f32 %v2056, %v2129
        %v2194 = vmax.f32 %v1945, %v2130
        %v2195 = vmax.f32 %v1947, %v2131
        %v2196 = vmax.f32 %v2058, %v2132
        %v2197 = vmax.f32 %v2060, %v2133
        %v2198 = vmax.f32 %v1951, %v2134
        %v2199 = vmax.f32 %v1953, %v2135
        %v2200 = vmax.f32 %v2064, %v2136
        %v2201 = vmax.f32 %v2066, %v2137
        %v2202 = vmax.f32 %v1955, %v2138
        %v2203 = vmax.f32 %v1957, %v2139
        %v2204 = vmax.f32 %v2068, %v2140
        %v2205 = vmax.f32 %v2070, %v2141
        %v2206 = vmax.f32 %v1961, %v2142
        %v2207 = vmax.f32 %v1963, %v2143
        %v2208 = vmax.f32 %v2074, %v2144
        %v2209 = vmax.f32 %v2076, %v2145
        %v2210 = vmax.f32 %v1965, %v2146
        %v2211 = vmax.f32 %v1967, %v2147
        %v2212 = vmax.f32 %v2078, %v2148
        %v2213 = vmax.f32 %v2080, %v2149
        %v2214 = vmax.f32 %v1971, %v2150
        %v2215 = vmax.f32 %v1973, %v2151
        %v2216 = vmax.f32 %v2084, %v2152
        %v2217 = vmax.f32 %v2086, %v2153
        %v2218 = vmax.f32 %v1975, %v2154
        %v2219 = vmax.f32 %v1977, %v2155
        %v2220 = vmax.f32 %v2088, %v2156
        %v2221 = vmax.f32 %v2090, %v2157
        %v2222 = vmax.f32 %v1981, %v2158
        %v2223 = vmax.f32 %v1983, %v2159
        %v2224 = vmax.f32 %v2094, %v2160
        %v2225 = vmax.f32 %v2096, %v2161
        %v2226 = vmax.f32 %v1985, %v2162
        %v2227 = vmax.f32 %v1987, %v2163
        %v2228 = vmax.f32 %v2098, %v2164
        %v2229 = vmax.f32 %v2100, %v2165
        %v2230 = vpack.c.bf16 %v2170, %v2166
        %v2231 = vpack.c.bf16 %v2171, %v2167
        %v2232 = vpack.c.bf16 %v2172, %v2168
        %v2233 = vpack.c.bf16 %v2173, %v2169
        %v2234 = vpack.c.bf16 %v2178, %v2174
        %v2235 = vpack.c.bf16 %v2179, %v2175
        %v2236 = vpack.c.bf16 %v2180, %v2176
        %v2237 = vpack.c.bf16 %v2181, %v2177
        %v2238 = vpack.c.bf16 %v2186, %v2182
        %v2239 = vpack.c.bf16 %v2187, %v2183
        %v2240 = vpack.c.bf16 %v2188, %v2184
        %v2241 = vpack.c.bf16 %v2189, %v2185
        %v2242 = vpack.c.bf16 %v2194, %v2190
        %v2243 = vpack.c.bf16 %v2195, %v2191
        %v2244 = vpack.c.bf16 %v2196, %v2192
        %v2245 = vpack.c.bf16 %v2197, %v2193
        %v2246 = vpack.c.bf16 %v2202, %v2198
        %v2247 = vpack.c.bf16 %v2203, %v2199
        %v2248 = vpack.c.bf16 %v2204, %v2200
        %v2249 = vpack.c.bf16 %v2205, %v2201
        %v2250 = vpack.c.bf16 %v2210, %v2206
        %v2251 = vpack.c.bf16 %v2211, %v2207
        %v2252 = vpack.c.bf16 %v2212, %v2208
        %v2253 = vpack.c.bf16 %v2213, %v2209
        %v2254 = vpack.c.bf16 %v2218, %v2214
        %v2255 = vpack.c.bf16 %v2219, %v2215
        %v2256 = vpack.c.bf16 %v2220, %v2216
        %v2257 = vpack.c.bf16 %v2221, %v2217
        %v2258 = vpack.c.bf16 %v2226, %v2222
        %v2259 = vpack.c.bf16 %v2227, %v2223
        %v2260 = vpack.c.bf16 %v2228, %v2224
        %v2261 = vpack.c.bf16 %v2229, %v2225
        %v2262 = vld [vmem:[%s7] sm:$0xf]
        %v2263 = vld [vmem:[%s7 + $0x4] sm:$0xf]
        %v2264 = vld [vmem:[%s7 + $0x8] sm:$0xf]
        %v2265 = vld [vmem:[%s7 + $0xc] sm:$0xf]
        %v2266 = vld [vmem:[%s7 + $0x10] sm:$0xf]
        %v2267 = vld [vmem:[%s7 + $0x14] sm:$0xf]
        %v2268 = vld [vmem:[%s7 + $0x18] sm:$0xf]
        %v2269 = vld [vmem:[%s7 + $0x1c] sm:$0xf]
        %v2270 = vld [vmem:[%s8] sm:$0xff]
        %v2271 = vld [vmem:[%s8 + $0x8] sm:$0xff]
        %v2272 = vld [vmem:[%s8 + $0x10] sm:$0xff]
        %v2273 = vld [vmem:[%s8 + $0x18] sm:$0xff]
        %v2274 = vld [vmem:[%s8 + $0x20] sm:$0xff]
        %v2275 = vld [vmem:[%s8 + $0x28] sm:$0xff]
        %v2276 = vld [vmem:[%s8 + $0x30] sm:$0xff]
        %v2277 = vld [vmem:[%s8 + $0x38] sm:$0xff]
        %2279 = vset.pattern.permute.xlu0 0
        %2280 = vperm.xlu0 %2279, %v2270
        %v2281 = vpop.permute.xlu0 %2280
        %2284 = vset.pattern.permute.xlu0 0
        %2285 = vperm.xlu0 %2284, %v2271
        %v2286 = vpop.permute.xlu0 %2285
        %2289 = vset.pattern.permute.xlu0 0
        %2290 = vperm.xlu0 %2289, %v2272
        %v2291 = vpop.permute.xlu0 %2290
        %2294 = vset.pattern.permute.xlu0 0
        %2295 = vperm.xlu0 %2294, %v2273
        %v2296 = vpop.permute.xlu0 %2295
        %2299 = vset.pattern.permute.xlu0 0
        %2300 = vperm.xlu0 %2299, %v2274
        %v2301 = vpop.permute.xlu0 %2300
        %2304 = vset.pattern.permute.xlu0 0
        %2305 = vperm.xlu0 %2304, %v2275
        %v2306 = vpop.permute.xlu0 %2305
        %2309 = vset.pattern.permute.xlu0 0
        %2310 = vperm.xlu0 %2309, %v2276
        %v2311 = vpop.permute.xlu0 %2310
        %2314 = vset.pattern.permute.xlu0 0
        %2315 = vperm.xlu0 %2314, %v2277
        %v2316 = vpop.permute.xlu0 %2315
        %v2326 = vunpack.c.l.b16 %v2262
        %v2327 = vunpack.c.l.b16 %v2263
        %v2328 = vunpack.c.l.b16 %v2264
        %v2329 = vunpack.c.l.b16 %v2265
        %v2330 = vunpack.c.l.b16 %v2266
        %v2331 = vunpack.c.l.b16 %v2267
        %v2332 = vunpack.c.l.b16 %v2268
        %v2333 = vunpack.c.l.b16 %v2269
        %v2334 = vpack.c.b16 %v2327, %v2326
        %v2335 = vpack.c.b16 %v2329, %v2328
        %v2336 = vpack.c.b16 %v2331, %v2330
        %v2337 = vpack.c.b16 %v2333, %v2332
        %2342 = vmatprep.subr.bf16.mxu0 %v2231
        %2343 = vmatpush1.bf16.msra.mxu0 %v2230
        %2344 = vmatprep.subr.bf16.mxu0 %v2235
        %2345 = vmatpush1.bf16.msra.mxu0 %v2234
        %2346 = vmatprep.subr.bf16.mxu0 %v2239
        %2347 = vmatpush1.bf16.msra.mxu0 %v2238
        %2348 = vmatprep.subr.bf16.mxu0 %v2243
        %2349 = vmatpush1.bf16.msra.mxu0 %v2242
        %2350 = vmatprep.subr.bf16.mxu0 %v2247
        %2351 = vmatpush1.bf16.msra.mxu0 %v2246
        %2352 = vmatprep.subr.bf16.mxu0 %v2251
        %2353 = vmatpush1.bf16.msra.mxu0 %v2250
        %2354 = vmatprep.subr.bf16.mxu0 %v2255
        %2355 = vmatpush1.bf16.msra.mxu0 %v2254
        %2356 = vmatprep.subr.bf16.mxu0 %v2259
        %2357 = vmatpush1.bf16.msra.mxu0 %v2258
        %2358 = vmatprep.subr.bf16.mxu0 0
        %2359 = vmatpush1.bf16.msra.mxu0 0
        %2360 = vmatprep.subr.bf16.mxu0 0
        %2361 = vmatpush1.bf16.msra.mxu0 0
        %2362 = vmatprep.subr.bf16.mxu0 0
        %2363 = vmatpush1.bf16.msra.mxu0 0
        %2364 = vmatprep.subr.bf16.mxu0 0
        %2365 = vmatpush1.bf16.msra.mxu0 0
        %2366 = vmatprep.subr.bf16.mxu0 0
        %2367 = vmatpush1.bf16.msra.mxu0 0
        %2368 = vmatprep.subr.bf16.mxu0 0
        %2369 = vmatpush1.bf16.msra.mxu0 0
        %2370 = vmatprep.subr.bf16.mxu0 0
        %2371 = vmatpush1.bf16.msra.mxu0 0
        %2372 = vmatprep.subr.bf16.mxu0 0
        %2373 = vmatpush1.bf16.msra.mxu0 0
        %2374 = vmatprep.mubr.bf16.mxu0 0
        %2375 = vmatmul.mubr.bf16.gmra.mrb[0].mxu0 %v2334
        %v2376 = vpop.f32.mrb[0].mxu0
        %v2377 = vadd.f32 %v2281, %v2376
        %v2378 = vpop.f32.mrb[0].mxu0
        %v2379 = vadd.f32 %v2281, %v2378
        %v2380 = vpop.f32.mrb[0].mxu0
        %v2381 = vadd.f32 %v2286, %v2380
        %v2382 = vpop.f32.mrb[0].mxu0
        %v2383 = vadd.f32 %v2286, %v2382
        %2384 = vmatprep.mubr.bf16.mxu0 0
        %2385 = vmatmul.mubr.bf16.gmra.mrb[0].mxu0 %v2335
        %v2386 = vpop.f32.mrb[0].mxu0
        %v2387 = vadd.f32 %v2291, %v2386
        %v2388 = vpop.f32.mrb[0].mxu0
        %v2389 = vadd.f32 %v2291, %v2388
        %v2390 = vpop.f32.mrb[0].mxu0
        %v2391 = vadd.f32 %v2296, %v2390
        %v2392 = vpop.f32.mrb[0].mxu0
        %v2393 = vadd.f32 %v2296, %v2392
        %2394 = vmatprep.mubr.bf16.mxu0 0
        %2395 = vmatmul.mubr.bf16.gmra.mrb[0].mxu0 %v2336
        %v2396 = vpop.f32.mrb[0].mxu0
        %v2397 = vadd.f32 %v2301, %v2396
        %v2398 = vpop.f32.mrb[0].mxu0
        %v2399 = vadd.f32 %v2301, %v2398
        %v2400 = vpop.f32.mrb[0].mxu0
        %v2401 = vadd.f32 %v2306, %v2400
        %v2402 = vpop.f32.mrb[0].mxu0
        %v2403 = vadd.f32 %v2306, %v2402
        %2404 = vmatprep.mubr.bf16.mxu0 0
        %2405 = vmatmul.mubr.bf16.gmra.mrb[0].mxu0 %v2337
        %v2406 = vpop.f32.mrb[0].mxu0
        %v2407 = vadd.f32 %v2311, %v2406
        %v2408 = vpop.f32.mrb[0].mxu0
        %v2409 = vadd.f32 %v2311, %v2408
        %v2410 = vpop.f32.mrb[0].mxu0
        %v2411 = vadd.f32 %v2316, %v2410
        %v2412 = vpop.f32.mrb[0].mxu0
        %v2413 = vadd.f32 %v2316, %v2412
        %2414 = vdwg.mxu0
        %2415 = vmatprep.subr.bf16.mxu0 %v2233
        %2416 = vmatpush1.bf16.msra.mxu0 %v2232
        %2417 = vmatprep.subr.bf16.mxu0 %v2237
        %2418 = vmatpush1.bf16.msra.mxu0 %v2236
        %2419 = vmatprep.subr.bf16.mxu0 %v2241
        %2420 = vmatpush1.bf16.msra.mxu0 %v2240
        %2421 = vmatprep.subr.bf16.mxu0 %v2245
        %2422 = vmatpush1.bf16.msra.mxu0 %v2244
        %2423 = vmatprep.subr.bf16.mxu0 %v2249
        %2424 = vmatpush1.bf16.msra.mxu0 %v2248
        %2425 = vmatprep.subr.bf16.mxu0 %v2253
        %2426 = vmatpush1.bf16.msra.mxu0 %v2252
        %2427 = vmatprep.subr.bf16.mxu0 %v2257
        %2428 = vmatpush1.bf16.msra.mxu0 %v2256
        %2429 = vmatprep.subr.bf16.mxu0 %v2261
        %2430 = vmatpush1.bf16.msra.mxu0 %v2260
        %2431 = vmatprep.subr.bf16.mxu0 0
        %2432 = vmatpush1.bf16.msra.mxu0 0
        %2433 = vmatprep.subr.bf16.mxu0 0
        %2434 = vmatpush1.bf16.msra.mxu0 0
        %2435 = vmatprep.subr.bf16.mxu0 0
        %2436 = vmatpush1.bf16.msra.mxu0 0
        %2437 = vmatprep.subr.bf16.mxu0 0
        %2438 = vmatpush1.bf16.msra.mxu0 0
        %2439 = vmatprep.subr.bf16.mxu0 0
        %2440 = vmatpush1.bf16.msra.mxu0 0
        %2441 = vmatprep.subr.bf16.mxu0 0
        %2442 = vmatpush1.bf16.msra.mxu0 0
        %2443 = vmatprep.subr.bf16.mxu0 0
        %2444 = vmatpush1.bf16.msra.mxu0 0
        %2445 = vmatprep.subr.bf16.mxu0 0
        %2446 = vmatpush1.bf16.msra.mxu0 0
        %2447 = vmatprep.mubr.bf16.mxu0 0
        %2448 = vmatmul.mubr.bf16.gmra.mrb[0].mxu0 %v2334
        %v2449 = vpop.f32.mrb[0].mxu0
        %v2450 = vadd.f32 %v2281, %v2449
        %v2451 = vpop.f32.mrb[0].mxu0
        %v2452 = vadd.f32 %v2281, %v2451
        %v2453 = vpop.f32.mrb[0].mxu0
        %v2454 = vadd.f32 %v2286, %v2453
        %v2455 = vpop.f32.mrb[0].mxu0
        %v2456 = vadd.f32 %v2286, %v2455
        %2457 = vmatprep.mubr.bf16.mxu0 0
        %2458 = vmatmul.mubr.bf16.gmra.mrb[0].mxu0 %v2335
        %v2459 = vpop.f32.mrb[0].mxu0
        %v2460 = vadd.f32 %v2291, %v2459
        %v2461 = vpop.f32.mrb[0].mxu0
        %v2462 = vadd.f32 %v2291, %v2461
        %v2463 = vpop.f32.mrb[0].mxu0
        %v2464 = vadd.f32 %v2296, %v2463
        %v2465 = vpop.f32.mrb[0].mxu0
        %v2466 = vadd.f32 %v2296, %v2465
        %2467 = vmatprep.mubr.bf16.mxu0 0
        %2468 = vmatmul.mubr.bf16.gmra.mrb[0].mxu0 %v2336
        %v2469 = vpop.f32.mrb[0].mxu0
        %v2470 = vadd.f32 %v2301, %v2469
        %v2471 = vpop.f32.mrb[0].mxu0
        %v2472 = vadd.f32 %v2301, %v2471
        %v2473 = vpop.f32.mrb[0].mxu0
        %v2474 = vadd.f32 %v2306, %v2473
        %v2475 = vpop.f32.mrb[0].mxu0
        %v2476 = vadd.f32 %v2306, %v2475
        %2477 = vmatprep.mubr.bf16.mxu0 0
        %2478 = vmatmul.mubr.bf16.gmra.mrb[0].mxu0 %v2337
        %v2479 = vpop.f32.mrb[0].mxu0
        %v2480 = vadd.f32 %v2311, %v2479
        %v2481 = vpop.f32.mrb[0].mxu0
        %v2482 = vadd.f32 %v2311, %v2481
        %v2483 = vpop.f32.mrb[0].mxu0
        %v2484 = vadd.f32 %v2316, %v2483
        %v2485 = vpop.f32.mrb[0].mxu0
        %v2486 = vadd.f32 %v2316, %v2485
        %2487 = vdwg.mxu0
        %v2488 = vmul.f32 %v2377, 0.01
        %v2489 = vmul.f32 %v2379, 0.01
        %v2490 = vmul.f32 %v2450, 0.01
        %v2491 = vmul.f32 %v2452, 0.01
        %v2492 = vmul.f32 %v2381, 0.01
        %v2493 = vmul.f32 %v2383, 0.01
        %v2494 = vmul.f32 %v2454, 0.01
        %v2495 = vmul.f32 %v2456, 0.01
        %v2496 = vmul.f32 %v2387, 0.01
        %v2497 = vmul.f32 %v2389, 0.01
        %v2498 = vmul.f32 %v2460, 0.01
        %v2499 = vmul.f32 %v2462, 0.01
        %v2500 = vmul.f32 %v2391, 0.01
        %v2501 = vmul.f32 %v2393, 0.01
        %v2502 = vmul.f32 %v2464, 0.01
        %v2503 = vmul.f32 %v2466, 0.01
        %v2504 = vmul.f32 %v2397, 0.01
        %v2505 = vmul.f32 %v2399, 0.01
        %v2506 = vmul.f32 %v2470, 0.01
        %v2507 = vmul.f32 %v2472, 0.01
        %v2508 = vmul.f32 %v2401, 0.01
        %v2509 = vmul.f32 %v2403, 0.01
        %v2510 = vmul.f32 %v2474, 0.01
        %v2511 = vmul.f32 %v2476, 0.01
        %v2512 = vmul.f32 %v2407, 0.01
        %v2513 = vmul.f32 %v2409, 0.01
        %v2514 = vmul.f32 %v2480, 0.01
        %v2515 = vmul.f32 %v2482, 0.01
        %v2516 = vmul.f32 %v2411, 0.01
        %v2517 = vmul.f32 %v2413, 0.01
        %v2518 = vmul.f32 %v2484, 0.01
        %v2519 = vmul.f32 %v2486, 0.01
        %v2520 = vmax.f32 %v2377, %v2488
        %v2521 = vmax.f32 %v2379, %v2489
        %v2522 = vmax.f32 %v2450, %v2490
        %v2523 = vmax.f32 %v2452, %v2491
        %v2524 = vmax.f32 %v2381, %v2492
        %v2525 = vmax.f32 %v2383, %v2493
        %v2526 = vmax.f32 %v2454, %v2494
        %v2527 = vmax.f32 %v2456, %v2495
        %v2528 = vmax.f32 %v2387, %v2496
        %v2529 = vmax.f32 %v2389, %v2497
        %v2530 = vmax.f32 %v2460, %v2498
        %v2531 = vmax.f32 %v2462, %v2499
        %v2532 = vmax.f32 %v2391, %v2500
        %v2533 = vmax.f32 %v2393, %v2501
        %v2534 = vmax.f32 %v2464, %v2502
        %v2535 = vmax.f32 %v2466, %v2503
        %v2536 = vmax.f32 %v2397, %v2504
        %v2537 = vmax.f32 %v2399, %v2505
        %v2538 = vmax.f32 %v2470, %v2506
        %v2539 = vmax.f32 %v2472, %v2507
        %v2540 = vmax.f32 %v2401, %v2508
        %v2541 = vmax.f32 %v2403, %v2509
        %v2542 = vmax.f32 %v2474, %v2510
        %v2543 = vmax.f32 %v2476, %v2511
        %v2544 = vmax.f32 %v2407, %v2512
        %v2545 = vmax.f32 %v2409, %v2513
        %v2546 = vmax.f32 %v2480, %v2514
        %v2547 = vmax.f32 %v2482, %v2515
        %v2548 = vmax.f32 %v2411, %v2516
        %v2549 = vmax.f32 %v2413, %v2517
        %v2550 = vmax.f32 %v2484, %v2518
        %v2551 = vmax.f32 %v2486, %v2519
        %v2552 = vld [vmem:[%s9] sm:$0xff]
        %v2553 = vld [vmem:[%s9 + $0x8] sm:$0xff]
        %v2554 = vld [vmem:[%s9 + $0x10] sm:$0xff]
        %v2555 = vld [vmem:[%s9 + $0x18] sm:$0xff]
        %v2556 = vld [vmem:[%s9 + $0x20] sm:$0xff]
        %v2557 = vld [vmem:[%s9 + $0x28] sm:$0xff]
        %v2558 = vld [vmem:[%s9 + $0x30] sm:$0xff]
        %v2559 = vld [vmem:[%s9 + $0x38] sm:$0xff]
        %2561 = vset.pattern.permute.xlu0 0
        %2562 = vperm.xlu0 %2561, %v2552
        %v2563 = vpop.permute.xlu0 %2562
        %2566 = vset.pattern.permute.xlu0 0
        %2567 = vperm.xlu0 %2566, %v2553
        %v2568 = vpop.permute.xlu0 %2567
        %2571 = vset.pattern.permute.xlu0 0
        %2572 = vperm.xlu0 %2571, %v2554
        %v2573 = vpop.permute.xlu0 %2572
        %2576 = vset.pattern.permute.xlu0 0
        %2577 = vperm.xlu0 %2576, %v2555
        %v2578 = vpop.permute.xlu0 %2577
        %2581 = vset.pattern.permute.xlu0 0
        %2582 = vperm.xlu0 %2581, %v2556
        %v2583 = vpop.permute.xlu0 %2582
        %2586 = vset.pattern.permute.xlu0 0
        %2587 = vperm.xlu0 %2586, %v2557
        %v2588 = vpop.permute.xlu0 %2587
        %2591 = vset.pattern.permute.xlu0 0
        %2592 = vperm.xlu0 %2591, %v2558
        %v2593 = vpop.permute.xlu0 %2592
        %2596 = vset.pattern.permute.xlu0 0
        %2597 = vperm.xlu0 %2596, %v2559
        %v2598 = vpop.permute.xlu0 %2597
        %v2600 = vmul.f32 %v2520, %v2563
        %v2601 = vmul.f32 %v2521, %v2563
        %v2602 = vmul.f32 %v2522, %v2563
        %v2603 = vmul.f32 %v2523, %v2563
        %v2604 = vmul.f32 %v2524, %v2568
        %v2605 = vmul.f32 %v2525, %v2568
        %v2606 = vmul.f32 %v2526, %v2568
        %v2607 = vmul.f32 %v2527, %v2568
        %v2608 = vmul.f32 %v2528, %v2573
        %v2609 = vmul.f32 %v2529, %v2573
        %v2610 = vmul.f32 %v2530, %v2573
        %v2611 = vmul.f32 %v2531, %v2573
        %v2612 = vmul.f32 %v2532, %v2578
        %v2613 = vmul.f32 %v2533, %v2578
        %v2614 = vmul.f32 %v2534, %v2578
        %v2615 = vmul.f32 %v2535, %v2578
        %v2616 = vmul.f32 %v2536, %v2583
        %v2617 = vmul.f32 %v2537, %v2583
        %v2618 = vmul.f32 %v2538, %v2583
        %v2619 = vmul.f32 %v2539, %v2583
        %v2620 = vmul.f32 %v2540, %v2588
        %v2621 = vmul.f32 %v2541, %v2588
        %v2622 = vmul.f32 %v2542, %v2588
        %v2623 = vmul.f32 %v2543, %v2588
        %v2624 = vmul.f32 %v2544, %v2593
        %v2625 = vmul.f32 %v2545, %v2593
        %v2626 = vmul.f32 %v2546, %v2593
        %v2627 = vmul.f32 %v2547, %v2593
        %v2628 = vmul.f32 %v2548, %v2598
        %v2629 = vmul.f32 %v2549, %v2598
        %v2630 = vmul.f32 %v2550, %v2598
        %v2631 = vmul.f32 %v2551, %v2598
        %v2632 = vadd.f32 %v2600, %v2604
        %v2633 = vadd.f32 %v2632, %v2608
        %v2634 = vadd.f32 %v2633, %v2612
        %v2635 = vadd.f32 %v2634, %v2616
        %v2636 = vadd.f32 %v2635, %v2620
        %v2637 = vadd.f32 %v2636, %v2624
        %v2638 = vadd.f32 %v2637, %v2628
        %v2639 = vrot.slane %v2638, 4
        %v2640 = vadd.f32 %v2638, %v2639
        %v2641 = vrot.slane %v2640, 2
        %v2642 = vadd.f32 %v2640, %v2641
        %v2643 = vrot.slane %v2642, 1
        %v2644 = vadd.f32 %v2642, %v2643
        %v2645 = vadd.f32 %v2601, %v2605
        %v2646 = vadd.f32 %v2645, %v2609
        %v2647 = vadd.f32 %v2646, %v2613
        %v2648 = vadd.f32 %v2647, %v2617
        %v2649 = vadd.f32 %v2648, %v2621
        %v2650 = vadd.f32 %v2649, %v2625
        %v2651 = vadd.f32 %v2650, %v2629
        %v2652 = vrot.slane %v2651, 4
        %v2653 = vadd.f32 %v2651, %v2652
        %v2654 = vrot.slane %v2653, 2
        %v2655 = vadd.f32 %v2653, %v2654
        %v2656 = vrot.slane %v2655, 1
        %v2657 = vadd.f32 %v2655, %v2656
        %v2658 = vadd.f32 %v2602, %v2606
        %v2659 = vadd.f32 %v2658, %v2610
        %v2660 = vadd.f32 %v2659, %v2614
        %v2661 = vadd.f32 %v2660, %v2618
        %v2662 = vadd.f32 %v2661, %v2622
        %v2663 = vadd.f32 %v2662, %v2626
        %v2664 = vadd.f32 %v2663, %v2630
        %v2665 = vrot.slane %v2664, 4
        %v2666 = vadd.f32 %v2664, %v2665
        %v2667 = vrot.slane %v2666, 2
        %v2668 = vadd.f32 %v2666, %v2667
        %v2669 = vrot.slane %v2668, 1
        %v2670 = vadd.f32 %v2668, %v2669
        %v2671 = vadd.f32 %v2603, %v2607
        %v2672 = vadd.f32 %v2671, %v2611
        %v2673 = vadd.f32 %v2672, %v2615
        %v2674 = vadd.f32 %v2673, %v2619
        %v2675 = vadd.f32 %v2674, %v2623
        %v2676 = vadd.f32 %v2675, %v2627
        %v2677 = vadd.f32 %v2676, %v2631
        %v2678 = vrot.slane %v2677, 4
        %v2679 = vadd.f32 %v2677, %v2678
        %v2680 = vrot.slane %v2679, 2
        %v2681 = vadd.f32 %v2679, %v2680
        %v2682 = vrot.slane %v2681, 1
        %v2683 = vadd.f32 %v2681, %v2682
        %v2684 = vld [vmem:[#allocation2] sm:$0x1]
        %2686 = vset.pattern.permute.xlu0 0
        %2687 = vperm.xlu0 %2686, %v2684
        %v2688 = vpop.permute.xlu0 %2687
        %v2690 = vlaneseq
        %v2691 = vshrl.u32 %v2690, 7
        %v2692 = vsub.s32 0, %v2691
        %v2693 = vrot.slane %v2688, %v2692
        %v2694 = vadd.f32 %v2644, %v2693
        %v2695 = vadd.f32 %v2657, %v2693
        %v2696 = vadd.f32 %v2670, %v2693
        %v2697 = vadd.f32 %v2683, %v2693
        %v2702 = vcombine.low %v2694, %v2695
        %v2703 = vcombine.low %v2696, %v2697
        %v2705 = vunpack.c.l.s4 1966171168
        %v2706 = vunpack.c.0.s8 %v2705
        %v2707 = vlaneseq
        %v2708 = vshrl.u32 %v2707, 7
        %v2709 = vsub.s32 %v2706, %v2708
        %v2710 = vrot.slane %v2702, %v2709
        %v2712 = vunpack.c.l.s4 1966171168
        %v2713 = vunpack.c.0.s8 %v2712
        %v2714 = vlaneseq
        %v2715 = vshrl.u32 %v2714, 7
        %v2716 = vsub.s32 %v2713, %v2715
        %v2717 = vrot.slane %v2703, %v2716
        %v2718 = vcombine.low %v2710, %v2717
        %v2720 = vunpack.c.l.s4 1966171168
        %v2721 = vunpack.c.0.s8 %v2720
        %v2722 = vlaneseq
        %v2723 = vshrl.u32 %v2722, 7
        %v2724 = vsub.s32 %v2721, %v2723
        %v2725 = vrot.slane %v2718, %v2724
        %v2727 = vlaneseq
        %vm2728 = vcmp.ge.s32.totalorder %v2727, 0
        %vm2729 = vcmp.lt.s32.totalorder %v2727, 512
        %vm2730 = vmand %vm2728, %vm2729
        %2731 = vst.msk [vmem:[%s394] sm:$0xf] %vm2730, %v2725
        %s2732 = sand.u32 %s271, 1
        %s2733 = scalar_lea.sflag [#allocation4], %s2732
        %s2734 = sand.u32 %s271, 1
        %s2735 = smul.addr %s2734, 4
        %s2736 = scalar_lea.vmem [#allocation3], %s2735
        // Predicated region
        $region65: #{regression_forward.1} parent=63 // pred_check
          %p2737 = pneg %p281
        $region66: #{regression_forward.1} parent=63 // pred_check_branch
          %2739 = sbr.rel (%p2737) target = $region68
        $region67: #{regression_forward.1} parent=63 // pred_region
          %s2740 = smul.u32 4, %s27
          %s2741 = ssub.s32 5, %s2740
          %p2742 = scmp.lt.s32.totalorder %s2741, 4
          %s2743 = scalar_select %p2742, %s2741, 4
          %s2744 = smul.u32 16, %s2743
          %s2746 = ssub.s32 64, %s2744
          %2747 = vsyncadd %s2733, %s2746
          %p2748 = scmp.ne.s32.totalorder 0, %s2744
          %s2749 = smul.addr %s2740, 16
          %s2750 = scalar_lea.hbm %s11, %s2749
          %s2751 = sshll.u32 %s2743, 4
          %s2752 = sshll.u32 %s2736, 4
          %s2753 = int_to_ptr.vmem [resolvable:$true] %s2752
          %2755 = dma.vmem_to_hbm [thread:$0]  (%p2748), %s2753, %s2751, %s2750, %s2733
        $region68: #{regression_forward.1} parent=63 // pred_fallthru
          _
      $region64: #{regression_forward.1} parent=5 // pred_fallthru
        _
      %p2756 = scmp.le.s32.totalorder 2, %s22
      // Predicated region
      $region69: #{regression_forward.1} parent=5 // pred_check
        %p2757 = pneg %p2756
      $region70: #{regression_forward.1} parent=5 // pred_check_branch
        %2759 = sbr.rel (%p2757) target = $region72
      $region71: #{regression_forward.1} parent=5 // pred_region
        %s2760 = ssub.s32 %s22, 2
        // Predicated region
        $region73: #{regression_forward.1} parent=71 // pred_check
          %p2761 = pneg %p287
        $region74: #{regression_forward.1} parent=71 // pred_check_branch
          %2763 = sbr.rel (%p2761) target = $region76
        $region75: #{regression_forward.1} parent=71 // pred_region
          %s2764 = sand.u32 %s272, 1
          %s2765 = scalar_lea.sflag [#allocation4], %s2764
          %s2766 = sand.u32 %s272, 1
          %s2767 = smul.addr %s2766, 4
          %s2768 = scalar_lea.vmem [#allocation3], %s2767
          %2769 = dma.done %s2765, 64
        $region76: #{regression_forward.1} parent=71 // pred_fallthru
          _
      $region72: #{regression_forward.1} parent=5 // pred_fallthru
        _
    $region6: #{regression_forward.1} parent=1 // loop_footer
      %s26 = sadd.s32 1, %s22
    $region7: #{regression_forward.1} parent=1 // loop_footer_branch
      %21 = sbr.rel target = $region3
    $region8: #{regression_forward.1} parent=1 // loop_exit
      _
    %2770 = vsyncpa [#allocation4], 1
    %s2771 = scalar_lea.sflag [#allocation4], 1
    %2772 = vsyncpa %s2771, 1

</llo_original>
